<compile_context>
chip_gen: v7x
topology: tpu7x:2x2x1
jax: 0.10.0
libtpu: 0.0.40
codegen_flags: <defaults>
</compile_context>

<pallas_src>
import functools
import typing as tp

import jax
import jax.numpy as jnp
from jax.experimental import pallas as pl
from jax.experimental.pallas import tpu as pltpu


# ----------------------------------------------------------------------------
# Hardware-aware helpers
# ----------------------------------------------------------------------------

def _round_up(x, m):
    return ((x + m - 1) // m) * m


def _vmem_capacity_bytes():
    """Physical per-core VMEM (64 MiB on v7x, 128 MiB on v5e/v6e)."""
    try:
        cap = int(pltpu.get_tpu_info().vmem_capacity_bytes)
        if cap > 0:
            return cap
    except Exception:
        pass
    try:
        kind = jax.devices()[0].device_kind.lower()
        if "v7" in kind or "7x" in kind:
            return 64 * 1024 * 1024
    except Exception:
        pass
    return 128 * 1024 * 1024


def _vmem_limit_bytes(capacity):
    """Scoped-VMEM request: leave compiler-scratch headroom (esp. on v7x)."""
    if capacity <= 64 * 1024 * 1024:
        return 48 * 1024 * 1024                      # v7x
    return min(capacity - 16 * 1024 * 1024, 112 * 1024 * 1024)  # v5e / v6e


def _elementwise_dtype():
    """bf16 VPU/EUP exists on v6e/v7x; v5e (and older) keep f32 elementwise."""
    try:
        kind = jax.devices()[0].device_kind.lower()
    except Exception:
        return jnp.float32
    for old in ("v2", "v3", "v4", "v5"):
        if old in kind:
            return jnp.float32
    return jnp.bfloat16


def _pick_token_tile(*, D, H, S, Cin, IO, elem_bytes, vmem_budget):
    """Largest token tile (multiple of 128, <= 1024) fitting the VMEM budget."""
    # Single-buffered bf16 weights + f32 bias columns (resident whole grid).
    weight_bytes = 2 * (D * Cin + D * D + H * D + D * H + IO * D) \
                   + 4 * (2 * D + H + IO)
    # Per-batch conditioning (double-buffered): cond + K + V^T + additive mask.
    per_batch = 2 * (4 * D + 2 * S * D + 2 * S * D + 4 * S)
    # Per token column: double-buffered x/out tiles + f32 intermediates
    # (tokens, q, attn: D each; scores/probs: S each; FFN hidden: H).
    per_tok = 2 * Cin * elem_bytes + 2 * IO * elem_bytes \
              + 4 * (3 * D + 2 * S + H)
    avail = int(vmem_budget * 0.75) - weight_bytes - per_batch
    if avail < per_tok * 128:
        # TODO(synk): for configs whose FFN weights alone blow the budget
        # (very large D/H on v7x), chunk ff_w1t/ff_w2t over H via
        # pltpu.emit_pipeline instead of shrinking the token tile further.
        return 128
    return max(128, min((avail // per_tok) // 128 * 128, 1024))


# ----------------------------------------------------------------------------
# Fused DiT-block kernel (grid = (batch, token_tiles))
# ----------------------------------------------------------------------------

def _fused_dit_kernel(x_ref, cond_ref, k_ref, vt_ref, maskadd_ref,
                      in_wt_ref, q_wt_ref, q_b_ref,
                      ff_w1t_ref, ff_b1_ref, ff_w2t_ref, ff_b2_ref,
                      out_wt_ref, out_b_ref, o_ref, *, ew_dtype):
    f32, bf16 = jnp.float32, jnp.bfloat16

    # ---- stage 1: input projection; cond already holds silu(cond)+in_b ------
    x = x_ref[...].astype(bf16)                                     # (Cin, tT)
    tokens = jnp.dot(in_wt_ref[...], x, preferred_element_type=f32)
    tokens = tokens + cond_ref[...]                                 # (D, tT)

    # ---- stage 2: masked cross-attention + residual --------------------------
    # q_wt / q_b carry the 1/sqrt(D) score scale (folded at init time).
    q = jnp.dot(q_wt_ref[...], tokens.astype(bf16),
                preferred_element_type=f32) + q_b_ref[...]          # (D, tT)
    s = jnp.dot(k_ref[...], q.astype(bf16),
                preferred_element_type=f32) + maskadd_ref[...]      # (S, tT)
    s_max = jnp.max(s, axis=0, keepdims=True)                       # (1, tT)
    p = jnp.exp(s - s_max)
    denom = jnp.sum(p, axis=0, keepdims=True)
    p = p * pl.reciprocal(denom, approx=True)                       # EUP vrcp
    attn = jnp.dot(vt_ref[...], p.astype(bf16),
                   preferred_element_type=f32)                      # (D, tT)
    tokens = tokens + attn

    # ---- stage 3: residual GELU FFN (elementwise bf16 on v6e/v7x) ------------
    h = jnp.dot(ff_w1t_ref[...], tokens.astype(bf16),
                preferred_element_type=f32) + ff_b1_ref[...]        # (H, tT)
    h = jax.nn.gelu(h.astype(ew_dtype))
    y = jnp.dot(ff_w2t_ref[...], h.astype(bf16),
                preferred_element_type=f32) + ff_b2_ref[...]        # (D, tT)
    tokens = tokens + y

    # ---- stage 4: output projection, lane-dense (IO, tT) store ---------------
    out = jnp.dot(out_wt_ref[...], tokens.astype(bf16),
                  preferred_element_type=f32) + out_b_ref[...]      # (IO, tT)
    o_ref[...] = out.astype(o_ref.dtype)


def fused_dit_forward(x_cat, cond, k, v_t, mask_add, params, io_channels,
                      token_tile=None):
    """x_cat: (B, Cin, T) NCL; cond: (B, D) [= silu(cond) + in_b];
    k: (B, S, D) bf16; v_t: (B, D, S) bf16; mask_add: (B, S) additive f32.
    Returns (B, io_channels, T)."""
    B, Cin, T = x_cat.shape
    D = params["q_wt"].shape[0]
    H = params["ff_w1t"].shape[0]
    S = k.shape[1]
    IO = io_channels

    capacity = _vmem_capacity_bytes()
    vmem_limit = _vmem_limit_bytes(capacity)

    if token_tile is not None:
        tT = _round_up(int(token_tile), 128)
    else:
        tT = _pick_token_tile(D=D, H=H, S=S, Cin=Cin, IO=IO,
                              elem_bytes=x_cat.dtype.itemsize,
                              vmem_budget=vmem_limit)
    # Lane-dense tiles: tT is a multiple of 128; pad T up to a tile multiple.
    # Padded columns compute on zero input (token-independent) and are sliced
    # off afterwards, so numerics are unchanged.
    tT = max(128, min(tT, _round_up(T, 128)))
    T_pad = _round_up(T, tT)
    if T_pad != T:
        x_cat = jnp.pad(x_cat, ((0, 0), (0, 0), (0, T_pad - T)))
    grid = (B, T_pad // tT)

    cond3 = cond.reshape(B, D, 1).astype(jnp.float32)
    mask3 = mask_add.reshape(B, S, 1).astype(jnp.float32)
    col = lambda v: v.reshape(-1, 1).astype(jnp.float32)

    # Grid-invariant operands (constant index_map): single-buffered — double
    # buffering would only double resident weight VMEM with zero benefit.
    def const_spec(shape):
        return pl.BlockSpec(shape, lambda b, j: (0, 0),
                            pipeline_mode=pl.Buffered(buffer_count=1))

    kern = functools.partial(_fused_dit_kernel, ew_dtype=_elementwise_dtype())

    flops = 2 * B * T_pad * (D * Cin + D * D + 2 * S * D + 2 * D * H + IO * D)
    transcendentals = B * T_pad * (S + H)
    bytes_accessed = (int(x_cat.size) * x_cat.dtype.itemsize
                      + B * IO * T_pad * x_cat.dtype.itemsize
                      + 2 * (D * Cin + D * D + H * D + D * H + IO * D)
                      + 2 * B * S * D * 2 + 4 * B * (S + D))

    out = pl.pallas_call(
        kern,
        out_shape=jax.ShapeDtypeStruct((B, IO, T_pad), x_cat.dtype),
        grid=grid,
        in_specs=[
            pl.BlockSpec((None, Cin, tT), lambda b, j: (b, 0, j)),   # x (NCL)
            # Per-batch conditioning: block index changes with b, so keep the
            # default double-buffering (refetched only once per batch anyway).
            pl.BlockSpec((None, D, 1), lambda b, j: (b, 0, 0)),      # cond
            pl.BlockSpec((None, S, D), lambda b, j: (b, 0, 0)),      # k
            pl.BlockSpec((None, D, S), lambda b, j: (b, 0, 0)),      # v^T
            pl.BlockSpec((None, S, 1), lambda b, j: (b, 0, 0)),      # mask add
            const_spec((D, Cin)),                                    # in_wt
            const_spec((D, D)),                                      # q_wt (scaled)
            const_spec((D, 1)),                                      # q_b  (scaled)
            const_spec((H, D)),                                      # ff_w1t
            const_spec((H, 1)),                                      # ff_b1
            const_spec((D, H)),                                      # ff_w2t
            const_spec((D, 1)),                                      # ff_b2
            const_spec((IO, D)),                                     # out_wt
            const_spec((IO, 1)),                                     # out_b
        ],
        out_specs=pl.BlockSpec((None, IO, tT), lambda b, j: (b, 0, j)),
        compiler_params=pltpu.CompilerParams(
            dimension_semantics=("parallel", "parallel"),
            vmem_limit_bytes=vmem_limit),
        cost_estimate=pl.CostEstimate(
            flops=int(flops), transcendentals=int(transcendentals),
            bytes_accessed=int(bytes_accessed)),
    )(x_cat, cond3, k, v_t, mask3,
      params["in_wt"], params["q_wt"], col(params["q_b"]),
      params["ff_w1t"], col(params["ff_b1"]),
      params["ff_w2t"], col(params["ff_b2"]),
      params["out_wt"], col(params["out_b"]))

    return out[:, :, :T] if T_pad != T else out


# ----------------------------------------------------------------------------
# DiffusionModel (abstract in PyTorch) + a concrete DiT-style realization
# ----------------------------------------------------------------------------

class DiffusionModel:
    def __call__(self, x, t, **kwargs):
        raise NotImplementedError()


class DiTDiffusionModel(DiffusionModel):
    """Concrete DiffusionModel: timestep/global conditioning + one DiT-style
    block (input proj, cross-attention, residual GELU FFN, output proj).
    The whole token hot path runs in a single fused Pallas kernel."""

    def __init__(self, key, io_channels, input_concat_channels, hidden_dim,
                 cross_attn_dim, global_dim, ff_mult=2, n_time_freqs=8,
                 token_tile=None):
        self.io_channels = io_channels
        self.hidden_dim = hidden_dim
        self.n_time_freqs = n_time_freqs
        self.token_tile = token_tile

        D = hidden_dim
        H = ff_mult * D
        cin = io_channels + input_concat_channels
        tdim = 2 * n_time_freqs
        bf16 = jnp.bfloat16
        scale = 1.0 / float(D) ** 0.5   # single-head attention score scale

        def w(k_, out_dim, in_dim, dtype=jnp.float32):
            return (jax.random.normal(k_, (out_dim, in_dim), jnp.float32)
                    * (1.0 / jnp.sqrt(in_dim))).astype(dtype)

        keys = jax.random.split(key, 12)
        # Weights stored PyTorch-style (out_features, in_features); hot-path
        # weights in bf16 (MXU operands), biases / tiny cond layers in f32.
        # The 1/sqrt(D) score scale is folded into q_wt / q_b here (free).
        self.params = {
            "time_w1": w(keys[0], D, tdim), "time_b1": jnp.zeros((D,)),
            "time_w2": w(keys[1], D, D),    "time_b2": jnp.zeros((D,)),
            "glob_w":  w(keys[2], D, global_dim), "glob_b": jnp.zeros((D,)),
            "in_wt":   w(keys[3], D, cin, bf16),  "in_b":  jnp.zeros((D,)),
            "q_wt":    (w(keys[4], D, D) * scale).astype(bf16),
            "q_b":     jnp.zeros((D,)) * scale,
            "k_w":     w(keys[5], D, cross_attn_dim), "k_b": jnp.zeros((D,)),
            "v_w":     w(keys[6], D, cross_attn_dim), "v_b": jnp.zeros((D,)),
            "ff_w1t":  w(keys[7], H, D, bf16), "ff_b1": jnp.zeros((H,)),
            "ff_w2t":  w(keys[8], D, H, bf16), "ff_b2": jnp.zeros((D,)),
            "out_wt":  w(keys[9], io_channels, D, bf16),
            "out_b":   jnp.zeros((io_channels,)),
        }

    def _timestep_embed(self, t):
        freqs = 2.0 ** jnp.arange(self.n_time_freqs, dtype=jnp.float32)
        ang = t[:, None].astype(jnp.float32) * freqs[None, :] * (2.0 * jnp.pi)
        return jnp.concatenate([jnp.sin(ang), jnp.cos(ang)], axis=-1)

    def __call__(self, x, t, cross_attn_cond=None, cross_attn_mask=None,
                 input_concat_cond=None, global_cond=None, **kwargs):
        # TODO(synk): CFG scale/dropout and prepend-cond paths of the full
        # stable-audio model are inference-time controls, not modeled here.
        p = self.params
        B = x.shape[0]

        # ---- conditioning vector: tiny (B,*) matmuls stay in plain JAX ------
        temb = self._timestep_embed(t)                               # (B, 2F)
        h = jax.nn.silu(temb @ p["time_w1"].T + p["time_b1"])
        cond = h @ p["time_w2"].T + p["time_b2"]
        if global_cond is not None:
            cond = cond + global_cond.astype(jnp.float32) @ p["glob_w"].T \
                   + p["glob_b"]
        # Fold the input-projection bias into the conditioning vector (one
        # fewer kernel input, one fewer (D,tT) broadcast-add per tile).
        cond = jax.nn.silu(cond) + p["in_b"]                         # (B, D)

        # ---- channel concat stays NCL; the NCL->token transpose is folded
        #      into the fused kernel (feature-major compute) ------------------
        if input_concat_cond is not None:
            x = jnp.concatenate([x, input_concat_cond], axis=1)      # (B,Cin,T)

        # ---- K / V projections of the conditioning sequence (small) ---------
        if cross_attn_cond is not None:
            ca = cross_attn_cond.astype(jnp.float32)
            S = ca.shape[1]
            k = jnp.einsum("bsc,dc->bsd", ca, p["k_w"]) + p["k_b"]
            v_t = jnp.einsum("bsc,dc->bds", ca, p["v_w"]) \
                  + p["v_b"][None, :, None]
            if cross_attn_mask is None:
                mask = jnp.ones((B, S), jnp.float32)
            else:
                mask = cross_attn_mask.astype(jnp.float32)
        else:
            # Fully-masked dummy context with zero V => zero attention output.
            S = 1
            k = jnp.zeros((B, 1, self.hidden_dim), jnp.float32)
            v_t = jnp.zeros((B, self.hidden_dim, 1), jnp.float32)
            mask = jnp.zeros((B, 1), jnp.float32)

        # Additive mask: one VPU add in-kernel instead of a compare+select.
        # NOTE: a real, fully-masked row degenerates to a uniform softmax over
        # V (same behavior as the previous -inf-fill version).
        mask_add = jnp.where(mask > 0, 0.0, -1e30).astype(jnp.float32)

        # Pad S to the bf16 sublane tile (16); padded rows are masked out and
        # carry zero V, so they contribute exactly nothing.
        S_pad = max(16, _round_up(S, 16))
        if S_pad != S:
            k = jnp.pad(k, ((0, 0), (0, S_pad - S), (0, 0)))
            v_t = jnp.pad(v_t, ((0, 0), (0, 0), (0, S_pad - S)))
            mask_add = jnp.pad(mask_add, ((0, 0), (0, S_pad - S)),
                               constant_values=-1e30)
        k = k.astype(jnp.bfloat16)
        v_t = v_t.astype(jnp.bfloat16)

        return fused_dit_forward(x, cond, k, v_t, mask_add, p,
                                 self.io_channels, token_tile=self.token_tile)


# ----------------------------------------------------------------------------
# DiffusionModelWrapper (faithful port of the PyTorch wrapper)
# ----------------------------------------------------------------------------

class DiffusionModelWrapper:
    def __init__(self, model: DiffusionModel, io_channels, sample_size,
                 sample_rate, min_input_length,
                 pretransform: tp.Optional[object] = None):
        self.io_channels = io_channels
        self.sample_size = sample_size
        self.sample_rate = sample_rate
        self.min_input_length = min_input_length
        self.model = model
        self.pretransform = pretransform  # TODO(synk): pretransform encode/decode not modeled

    def forward(self, x, t, **kwargs):
        return self.model(x, t, **kwargs)

    __call__ = forward


# ----------------------------------------------------------------------------
# Demo
# ----------------------------------------------------------------------------

if __name__ == "__main__":
    key = jax.random.PRNGKey(0)
    kx, kt, kc, kg, ki, kparams = jax.random.split(key, 6)

    # small demo shapes (NCL latent)
    B, IO, T = 2, 4, 16      # x: (batch, io_channels, latent_length)
    CC = 2                   # input-concat channels
    S, DC = 8, 16            # cross-attn conditioning: (B, seq, dim)
    G = 16                   # global conditioning dim
    D, FF = 32, 2            # hidden dim / FFN mult

    x = jax.random.normal(kx, (B, IO, T), jnp.float32)
    t = jax.random.uniform(kt, (B,), jnp.float32)
    cross = jax.random.normal(kc, (B, S, DC), jnp.float32)
    cross_mask = jnp.ones((B, S), jnp.float32).at[:, -2:].set(0.0)
    glob = jax.random.normal(kg, (B, G), jnp.float32)
    concat = jax.random.normal(ki, (B, CC, T), jnp.float32)

    inner = DiTDiffusionModel(
        kparams, io_channels=IO, input_concat_channels=CC, hidden_dim=D,
        cross_attn_dim=DC, global_dim=G, ff_mult=FF)

    wrapper = DiffusionModelWrapper(
        model=inner, io_channels=IO, sample_size=T, sample_rate=44100,
        min_input_length=T, pretransform=None)

    @jax.jit
    def run(x, t, cross, cross_mask, glob, concat):
        return wrapper(x, t, cross_attn_cond=cross, cross_attn_mask=cross_mask,
                       input_concat_cond=concat, global_cond=glob)

    out = run(x, t, cross, cross_mask, glob, concat)
    out = jax.block_until_ready(out)
    assert out.shape == (B, IO, T), out.shape
    assert bool(jnp.all(jnp.isfinite(out)))
    print("KERNEL_OK")
</pallas_src>

<mosaic_0001>
module attributes {stable_mosaic.version = 11 : i64} {
  func.func @_fused_dit_kernel(%arg0: i32, %arg1: i32, %arg2: memref<1x6x128xf32, #tpu.memory_space<vmem>>, %arg3: memref<1x32x1xf32, #tpu.memory_space<vmem>>, %arg4: memref<1x16x32xbf16, #tpu.memory_space<vmem>>, %arg5: memref<1x32x16xbf16, #tpu.memory_space<vmem>>, %arg6: memref<1x16x1xf32, #tpu.memory_space<vmem>>, %arg7: memref<32x6xbf16, #tpu.memory_space<vmem>>, %arg8: memref<32x32xbf16, #tpu.memory_space<vmem>>, %arg9: memref<32x1xf32, #tpu.memory_space<vmem>>, %arg10: memref<64x32xbf16, #tpu.memory_space<vmem>>, %arg11: memref<64x1xf32, #tpu.memory_space<vmem>>, %arg12: memref<32x64xbf16, #tpu.memory_space<vmem>>, %arg13: memref<32x1xf32, #tpu.memory_space<vmem>>, %arg14: memref<4x32xbf16, #tpu.memory_space<vmem>>, %arg15: memref<4x1xf32, #tpu.memory_space<vmem>>, %arg16: memref<1x4x128xf32, #tpu.memory_space<vmem>>) attributes {dimension_semantics = [#tpu.dimension_semantics<parallel>, #tpu.dimension_semantics<parallel>], iteration_bounds = array<i64: 2, 1>, scalar_prefetch = 0 : i64, scratch_operands = 0 : i64, tpu.core_type = #tpu.core_type<tc>, window_params = [{transform_indices = @transform_0, window_bounds = array<i64: 1, 6, 128>}, {transform_indices = @transform_1, window_bounds = array<i64: 1, 32, 1>}, {transform_indices = @transform_2, window_bounds = array<i64: 1, 16, 32>}, {transform_indices = @transform_3, window_bounds = array<i64: 1, 32, 16>}, {transform_indices = @transform_4, window_bounds = array<i64: 1, 16, 1>}, {pipeline_mode = #tpu.pipeline_mode<synchronous>, transform_indices = @transform_5, window_bounds = array<i64: 32, 6>}, {pipeline_mode = #tpu.pipeline_mode<synchronous>, transform_indices = @transform_6, window_bounds = array<i64: 32, 32>}, {pipeline_mode = #tpu.pipeline_mode<synchronous>, transform_indices = @transform_7, window_bounds = array<i64: 32, 1>}, {pipeline_mode = #tpu.pipeline_mode<synchronous>, transform_indices = @transform_8, window_bounds = array<i64: 64, 32>}, {pipeline_mode = #tpu.pipeline_mode<synchronous>, transform_indices = @transform_9, window_bounds = array<i64: 64, 1>}, {pipeline_mode = #tpu.pipeline_mode<synchronous>, transform_indices = @transform_10, window_bounds = array<i64: 32, 64>}, {pipeline_mode = #tpu.pipeline_mode<synchronous>, transform_indices = @transform_11, window_bounds = array<i64: 32, 1>}, {pipeline_mode = #tpu.pipeline_mode<synchronous>, transform_indices = @transform_12, window_bounds = array<i64: 4, 32>}, {pipeline_mode = #tpu.pipeline_mode<synchronous>, transform_indices = @transform_13, window_bounds = array<i64: 4, 1>}, {transform_indices = @transform_14, window_bounds = array<i64: 1, 4, 128>}]} {
    %c0 = arith.constant 0 : index
    %c0_0 = arith.constant 0 : index
    %c0_1 = arith.constant 0 : index
    %0 = vector.load %arg2[%c0, %c0_0, %c0_1] : memref<1x6x128xf32, #tpu.memory_space<vmem>>, vector<1x6x128xf32>
    %1 = vector.shape_cast %0 : vector<1x6x128xf32> to vector<6x128xf32>
    %2 = arith.truncf %1 : vector<6x128xf32> to vector<6x128xbf16>
    %c0_2 = arith.constant 0 : index
    %c0_3 = arith.constant 0 : index
    %3 = vector.load %arg7[%c0_2, %c0_3] : memref<32x6xbf16, #tpu.memory_space<vmem>>, vector<32x6xbf16>
    %cst = arith.constant dense<0.000000e+00> : vector<32x128xf32>
    %4 = tpu.matmul %3, %2, %cst {dimension_numbers = #tpu.dot_dimension_numbers<[1], [0], [0], [1], [0, 0, 1, 1], [], []>} : vector<32x6xbf16>, vector<6x128xbf16>, vector<32x128xf32> -> vector<32x128xf32>
    %c0_4 = arith.constant 0 : index
    %c0_5 = arith.constant 0 : index
    %c0_6 = arith.constant 0 : index
    %5 = vector.load %arg3[%c0_4, %c0_5, %c0_6] : memref<1x32x1xf32, #tpu.memory_space<vmem>>, vector<1x32x1xf32>
    %6 = vector.shape_cast %5 : vector<1x32x1xf32> to vector<32x1xf32>
    %7 = vector.broadcast %6 : vector<32x1xf32> to vector<32x128xf32>
    %8 = arith.addf %4, %7 : vector<32x128xf32>
    %c0_7 = arith.constant 0 : index
    %c0_8 = arith.constant 0 : index
    %9 = vector.load %arg8[%c0_7, %c0_8] : memref<32x32xbf16, #tpu.memory_space<vmem>>, vector<32x32xbf16>
    %10 = arith.truncf %8 : vector<32x128xf32> to vector<32x128xbf16>
    %cst_9 = arith.constant dense<0.000000e+00> : vector<32x128xf32>
    %11 = tpu.matmul %9, %10, %cst_9 {dimension_numbers = #tpu.dot_dimension_numbers<[1], [0], [0], [1], [0, 0, 1, 1], [], []>} : vector<32x32xbf16>, vector<32x128xbf16>, vector<32x128xf32> -> vector<32x128xf32>
    %c0_10 = arith.constant 0 : index
    %c0_11 = arith.constant 0 : index
    %12 = vector.load %arg9[%c0_10, %c0_11] : memref<32x1xf32, #tpu.memory_space<vmem>>, vector<32x1xf32>
    %13 = vector.broadcast %12 : vector<32x1xf32> to vector<32x128xf32>
    %14 = arith.addf %11, %13 : vector<32x128xf32>
    %c0_12 = arith.constant 0 : index
    %c0_13 = arith.constant 0 : index
    %c0_14 = arith.constant 0 : index
    %15 = vector.load %arg4[%c0_12, %c0_13, %c0_14] : memref<1x16x32xbf16, #tpu.memory_space<vmem>>, vector<1x16x32xbf16>
    %16 = vector.shape_cast %15 : vector<1x16x32xbf16> to vector<16x32xbf16>
    %17 = arith.truncf %14 : vector<32x128xf32> to vector<32x128xbf16>
    %cst_15 = arith.constant dense<0.000000e+00> : vector<16x128xf32>
    %18 = tpu.matmul %16, %17, %cst_15 {dimension_numbers = #tpu.dot_dimension_numbers<[1], [0], [0], [1], [0, 0, 1, 1], [], []>} : vector<16x32xbf16>, vector<32x128xbf16>, vector<16x128xf32> -> vector<16x128xf32>
    %c0_16 = arith.constant 0 : index
    %c0_17 = arith.constant 0 : index
    %c0_18 = arith.constant 0 : index
    %19 = vector.load %arg6[%c0_16, %c0_17, %c0_18] : memref<1x16x1xf32, #tpu.memory_space<vmem>>, vector<1x16x1xf32>
    %20 = vector.shape_cast %19 : vector<1x16x1xf32> to vector<16x1xf32>
    %21 = vector.broadcast %20 : vector<16x1xf32> to vector<16x128xf32>
    %22 = arith.addf %18, %21 : vector<16x128xf32>
    %cst_19 = arith.constant dense<0xFF800000> : vector<128xf32>
    %23 = vector.multi_reduction <maximumf>, %22, %cst_19 [0] : vector<16x128xf32> to vector<128xf32>
    %24 = vector.shape_cast %23 : vector<128xf32> to vector<1x128xf32>
    %25 = vector.broadcast %24 : vector<1x128xf32> to vector<16x128xf32>
    %26 = arith.subf %22, %25 : vector<16x128xf32>
    %27 = math.exp %26 : vector<16x128xf32>
    %cst_20 = arith.constant dense<0.000000e+00> : vector<128xf32>
    %28 = vector.multi_reduction <add>, %27, %cst_20 [0] : vector<16x128xf32> to vector<128xf32>
    %29 = vector.shape_cast %28 : vector<128xf32> to vector<1x128xf32>
    %30 = tpu.reciprocal %29 {approx = true} : vector<1x128xf32> -> vector<1x128xf32>
    %31 = vector.broadcast %30 : vector<1x128xf32> to vector<16x128xf32>
    %32 = arith.mulf %27, %31 : vector<16x128xf32>
    %c0_21 = arith.constant 0 : index
    %c0_22 = arith.constant 0 : index
    %c0_23 = arith.constant 0 : index
    %33 = vector.load %arg5[%c0_21, %c0_22, %c0_23] : memref<1x32x16xbf16, #tpu.memory_space<vmem>>, vector<1x32x16xbf16>
    %34 = vector.shape_cast %33 : vector<1x32x16xbf16> to vector<32x16xbf16>
    %35 = arith.truncf %32 : vector<16x128xf32> to vector<16x128xbf16>
    %cst_24 = arith.constant dense<0.000000e+00> : vector<32x128xf32>
    %36 = tpu.matmul %34, %35, %cst_24 {dimension_numbers = #tpu.dot_dimension_numbers<[1], [0], [0], [1], [0, 0, 1, 1], [], []>} : vector<32x16xbf16>, vector<16x128xbf16>, vector<32x128xf32> -> vector<32x128xf32>
    %37 = arith.addf %8, %36 : vector<32x128xf32>
    %c0_25 = arith.constant 0 : index
    %c0_26 = arith.constant 0 : index
    %38 = vector.load %arg10[%c0_25, %c0_26] : memref<64x32xbf16, #tpu.memory_space<vmem>>, vector<64x32xbf16>
    %39 = arith.truncf %37 : vector<32x128xf32> to vector<32x128xbf16>
    %cst_27 = arith.constant dense<0.000000e+00> : vector<64x128xf32>
    %40 = tpu.matmul %38, %39, %cst_27 {dimension_numbers = #tpu.dot_dimension_numbers<[1], [0], [0], [1], [0, 0, 1, 1], [], []>} : vector<64x32xbf16>, vector<32x128xbf16>, vector<64x128xf32> -> vector<64x128xf32>
    %c0_28 = arith.constant 0 : index
    %c0_29 = arith.constant 0 : index
    %41 = vector.load %arg11[%c0_28, %c0_29] : memref<64x1xf32, #tpu.memory_space<vmem>>, vector<64x1xf32>
    %42 = vector.broadcast %41 : vector<64x1xf32> to vector<64x128xf32>
    %43 = arith.addf %40, %42 : vector<64x128xf32>
    %44 = arith.truncf %43 : vector<64x128xf32> to vector<64x128xbf16>
    %45 = arith.mulf %44, %44 : vector<64x128xbf16>
    %46 = arith.mulf %44, %45 : vector<64x128xbf16>
    %cst_30 = arith.constant 4.467770e-02 : bf16
    %47 = vector.broadcast %cst_30 : bf16 to vector<64x128xbf16>
    %48 = arith.mulf %47, %46 : vector<64x128xbf16>
    %49 = arith.addf %44, %48 : vector<64x128xbf16>
    %cst_31 = arith.constant 7.968750e-01 : bf16
    %50 = vector.broadcast %cst_31 : bf16 to vector<64x128xbf16>
    %51 = arith.mulf %50, %49 : vector<64x128xbf16>
    %52 = math.tanh %51 : vector<64x128xbf16>
    %cst_32 = arith.constant 1.000000e+00 : bf16
    %53 = vector.broadcast %cst_32 : bf16 to vector<64x128xbf16>
    %54 = arith.addf %53, %52 : vector<64x128xbf16>
    %cst_33 = arith.constant 5.000000e-01 : bf16
    %55 = vector.broadcast %cst_33 : bf16 to vector<64x128xbf16>
    %56 = arith.mulf %55, %54 : vector<64x128xbf16>
    %57 = arith.mulf %44, %56 : vector<64x128xbf16>
    %c0_34 = arith.constant 0 : index
    %c0_35 = arith.constant 0 : index
    %58 = vector.load %arg12[%c0_34, %c0_35] : memref<32x64xbf16, #tpu.memory_space<vmem>>, vector<32x64xbf16>
    %cst_36 = arith.constant dense<0.000000e+00> : vector<32x128xf32>
    %59 = tpu.matmul %58, %57, %cst_36 {dimension_numbers = #tpu.dot_dimension_numbers<[1], [0], [0], [1], [0, 0, 1, 1], [], []>} : vector<32x64xbf16>, vector<64x128xbf16>, vector<32x128xf32> -> vector<32x128xf32>
    %c0_37 = arith.constant 0 : index
    %c0_38 = arith.constant 0 : index
    %60 = vector.load %arg13[%c0_37, %c0_38] : memref<32x1xf32, #tpu.memory_space<vmem>>, vector<32x1xf32>
    %61 = vector.broadcast %60 : vector<32x1xf32> to vector<32x128xf32>
    %62 = arith.addf %59, %61 : vector<32x128xf32>
    %63 = arith.addf %37, %62 : vector<32x128xf32>
    %c0_39 = arith.constant 0 : index
    %c0_40 = arith.constant 0 : index
    %64 = vector.load %arg14[%c0_39, %c0_40] : memref<4x32xbf16, #tpu.memory_space<vmem>>, vector<4x32xbf16>
    %65 = arith.truncf %63 : vector<32x128xf32> to vector<32x128xbf16>
    %cst_41 = arith.constant dense<0.000000e+00> : vector<4x128xf32>
    %66 = tpu.matmul %64, %65, %cst_41 {dimension_numbers = #tpu.dot_dimension_numbers<[1], [0], [0], [1], [0, 0, 1, 1], [], []>} : vector<4x32xbf16>, vector<32x128xbf16>, vector<4x128xf32> -> vector<4x128xf32>
    %c0_42 = arith.constant 0 : index
    %c0_43 = arith.constant 0 : index
    %67 = vector.load %arg15[%c0_42, %c0_43] : memref<4x1xf32, #tpu.memory_space<vmem>>, vector<4x1xf32>
    %68 = vector.broadcast %67 : vector<4x1xf32> to vector<4x128xf32>
    %69 = arith.addf %66, %68 : vector<4x128xf32>
    %c0_44 = arith.constant 0 : index
    %c0_45 = arith.constant 0 : index
    %c0_46 = arith.constant 0 : index
    %70 = vector.load %arg16[%c0_44, %c0_45, %c0_46] : memref<1x4x128xf32, #tpu.memory_space<vmem>>, vector<1x4x128xf32>
    %71 = vector.shape_cast %70 : vector<1x4x128xf32> to vector<4x128xf32>
    %72 = vector.shape_cast %69 : vector<4x128xf32> to vector<1x4x128xf32>
    tpu.vector_store %arg16[%c0_44, %c0_45, %c0_46], %72 {strides = array<i32>} : memref<1x4x128xf32, #tpu.memory_space<vmem>>, vector<1x4x128xf32>,
    return
  }
  func.func @transform_0(%arg0: i32, %arg1: i32) -> (i32, i32, i32) {
    %c0_i32 = arith.constant 0 : i32
    %c0_i32_0 = arith.constant 0 : i32
    return %arg0, %c0_i32, %arg1 : i32, i32, i32
  }
  func.func @transform_1(%arg0: i32, %arg1: i32) -> (i32, i32, i32) {
    %c0_i32 = arith.constant 0 : i32
    %c0_i32_0 = arith.constant 0 : i32
    %c0_i32_1 = arith.constant 0 : i32
    return %arg0, %c0_i32, %c0_i32_0 : i32, i32, i32
  }
  func.func @transform_2(%arg0: i32, %arg1: i32) -> (i32, i32, i32) {
    %c0_i32 = arith.constant 0 : i32
    %c0_i32_0 = arith.constant 0 : i32
    %c0_i32_1 = arith.constant 0 : i32
    return %arg0, %c0_i32, %c0_i32_0 : i32, i32, i32
  }
  func.func @transform_3(%arg0: i32, %arg1: i32) -> (i32, i32, i32) {
    %c0_i32 = arith.constant 0 : i32
    %c0_i32_0 = arith.constant 0 : i32
    %c0_i32_1 = arith.constant 0 : i32
    return %arg0, %c0_i32, %c0_i32_0 : i32, i32, i32
  }
  func.func @transform_4(%arg0: i32, %arg1: i32) -> (i32, i32, i32) {
    %c0_i32 = arith.constant 0 : i32
    %c0_i32_0 = arith.constant 0 : i32
    %c0_i32_1 = arith.constant 0 : i32
    return %arg0, %c0_i32, %c0_i32_0 : i32, i32, i32
  }
  func.func @transform_5(%arg0: i32, %arg1: i32) -> (i32, i32) {
    %c0_i32 = arith.constant 0 : i32
    %c0_i32_0 = arith.constant 0 : i32
    %c0_i32_1 = arith.constant 0 : i32
    return %c0_i32, %c0_i32_0 : i32, i32
  }
  func.func @transform_6(%arg0: i32, %arg1: i32) -> (i32, i32) {
    %c0_i32 = arith.constant 0 : i32
    %c0_i32_0 = arith.constant 0 : i32
    %c0_i32_1 = arith.constant 0 : i32
    return %c0_i32, %c0_i32_0 : i32, i32
  }
  func.func @transform_7(%arg0: i32, %arg1: i32) -> (i32, i32) {
    %c0_i32 = arith.constant 0 : i32
    %c0_i32_0 = arith.constant 0 : i32
    %c0_i32_1 = arith.constant 0 : i32
    return %c0_i32, %c0_i32_0 : i32, i32
  }
  func.func @transform_8(%arg0: i32, %arg1: i32) -> (i32, i32) {
    %c0_i32 = arith.constant 0 : i32
    %c0_i32_0 = arith.constant 0 : i32
    %c0_i32_1 = arith.constant 0 : i32
    return %c0_i32, %c0_i32_0 : i32, i32
  }
  func.func @transform_9(%arg0: i32, %arg1: i32) -> (i32, i32) {
    %c0_i32 = arith.constant 0 : i32
    %c0_i32_0 = arith.constant 0 : i32
    %c0_i32_1 = arith.constant 0 : i32
    return %c0_i32, %c0_i32_0 : i32, i32
  }
  func.func @transform_10(%arg0: i32, %arg1: i32) -> (i32, i32) {
    %c0_i32 = arith.constant 0 : i32
    %c0_i32_0 = arith.constant 0 : i32
    %c0_i32_1 = arith.constant 0 : i32
    return %c0_i32, %c0_i32_0 : i32, i32
  }
  func.func @transform_11(%arg0: i32, %arg1: i32) -> (i32, i32) {
    %c0_i32 = arith.constant 0 : i32
    %c0_i32_0 = arith.constant 0 : i32
    %c0_i32_1 = arith.constant 0 : i32
    return %c0_i32, %c0_i32_0 : i32, i32
  }
  func.func @transform_12(%arg0: i32, %arg1: i32) -> (i32, i32) {
    %c0_i32 = arith.constant 0 : i32
    %c0_i32_0 = arith.constant 0 : i32
    %c0_i32_1 = arith.constant 0 : i32
    return %c0_i32, %c0_i32_0 : i32, i32
  }
  func.func @transform_13(%arg0: i32, %arg1: i32) -> (i32, i32) {
    %c0_i32 = arith.constant 0 : i32
    %c0_i32_0 = arith.constant 0 : i32
    %c0_i32_1 = arith.constant 0 : i32
    return %c0_i32, %c0_i32_0 : i32, i32
  }
  func.func @transform_14(%arg0: i32, %arg1: i32) -> (i32, i32, i32) {
    %c0_i32 = arith.constant 0 : i32
    %c0_i32_0 = arith.constant 0 : i32
    return %arg0, %c0_i32, %arg1 : i32, i32, i32
  }
}

</mosaic_0001>

<llo_original>
// kernel: run.1
$region0: #{run.1}
  #allocation0 [shape = 'u32[]', space=smem, size = 0x4, offset = 0x4, fixed_abs, tag = 'smem constant byte address 0x4 - core index']
  #allocation1 [shape = 'u32[144,128]{1,0:T(1,128)}', space=vmem, size = 0x12000, scoped, tag = 'internal scratch']
  %s0 = inlined_call_operand.hbm [shape: f32[2,6,128], index: 0, kind: input, shape index: {}]
  %s1 = inlined_call_operand.hbm [shape: f32[2,32,1], index: 1, kind: input, shape index: {}]
  %s2 = inlined_call_operand.hbm [shape: bf16[2,16,32], index: 2, kind: input, shape index: {}]
  %s3 = inlined_call_operand.hbm [shape: bf16[2,32,16], index: 3, kind: input, shape index: {}]
  %s4 = inlined_call_operand.hbm [shape: f32[2,16,1], index: 4, kind: input, shape index: {}]
  %s5 = inlined_call_operand.hbm [shape: bf16[32,6], index: 5, kind: input, shape index: {}]
  %s6 = inlined_call_operand.hbm [shape: bf16[32,32], index: 6, kind: input, shape index: {}]
  %s7 = inlined_call_operand.hbm [shape: f32[32,1], index: 7, kind: input, shape index: {}, may-alias: {7,11}]
  %s8 = inlined_call_operand.hbm [shape: bf16[64,32], index: 8, kind: input, shape index: {}]
  %s9 = inlined_call_operand.hbm [shape: f32[64,1], index: 9, kind: input, shape index: {}]
  %s10 = inlined_call_operand.hbm [shape: bf16[32,64], index: 10, kind: input, shape index: {}]
  %s11 = inlined_call_operand.hbm [shape: f32[32,1], index: 11, kind: input, shape index: {}, may-alias: {7,11}]
  %s12 = inlined_call_operand.hbm [shape: bf16[4,32], index: 12, kind: input, shape index: {}]
  %s13 = inlined_call_operand.hbm [shape: f32[4,1], index: 13, kind: input, shape index: {}]
  %s14 = inlined_call_operand.hbm [shape: f32[2,4,128], index: 14, kind: output, shape index: {}]
  %s15 = sld [smem:[#allocation0]]
  $region145: #{run.1} parent=0
    _
  %s17 = ssub.s32 1, %s15
  %s18 = scalar_select 0, %s17, %s15
  $region1: #{run.1} parent=0
    #allocation2 [shape = 'u8[8192]{0}', space=vmem, size = 0x2000, scoped, tag = 'input window, operand 0']
    #allocation3 [shape = 's32[2]{0}', space=sflag, size = 0x8, scoped, tag = 'scoped memory for run.1']
    #allocation4 [shape = 's32[2]{0}', space=sflag, size = 0x8, scoped, tag = 'scoped memory for run.1']
    #allocation5 [shape = 'u8[32768]{0}', space=vmem, size = 0x8000, scoped, tag = 'input window, operand 1']
    #allocation6 [shape = 's32[2]{0}', space=sflag, size = 0x8, scoped, tag = 'scoped memory for run.1']
    #allocation7 [shape = 'u8[8192]{0}', space=vmem, size = 0x2000, scoped, tag = 'input window, operand 2']
    #allocation8 [shape = 'u8[16384]{0}', space=vmem, size = 0x4000, scoped, tag = 'input window, operand 3']
    #allocation9 [shape = 's32[2]{0}', space=sflag, size = 0x8, scoped, tag = 'scoped memory for run.1']
    #allocation10 [shape = 'u8[16384]{0}', space=vmem, size = 0x4000, scoped, tag = 'input window, operand 4']
    #allocation11 [shape = 'u8[8192]{0}', space=vmem, size = 0x2000, scoped, tag = 'input window, operand 5, single buffered']
    #allocation12 [shape = 's32[1]{0}', space=sflag, size = 0x4, scoped, tag = 'scoped memory for run.1']
    #allocation13 [shape = 'u8[8192]{0}', space=vmem, size = 0x2000, scoped, tag = 'input window, operand 6, single buffered']
    #allocation14 [shape = 'u8[16384]{0}', space=vmem, size = 0x4000, scoped, tag = 'input window, operand 7, single buffered']
    #allocation15 [shape = 's32[1]{0}', space=sflag, size = 0x4, scoped, tag = 'scoped memory for run.1']
    #allocation16 [shape = 'u8[16384]{0}', space=vmem, size = 0x4000, scoped, tag = 'input window, operand 8, single buffered']
    #allocation17 [shape = 'u8[32768]{0}', space=vmem, size = 0x8000, scoped, tag = 'input window, operand 9, single buffered']
    #allocation18 [shape = 's32[1]{0}', space=sflag, size = 0x4, scoped, tag = 'scoped memory for run.1']
    #allocation19 [shape = 'u8[8192]{0}', space=vmem, size = 0x2000, scoped, tag = 'input window, operand 10, single buffered']
    #allocation20 [shape = 'u8[16384]{0}', space=vmem, size = 0x4000, scoped, tag = 'input window, operand 11, single buffered']
    #allocation21 [shape = 's32[1]{0}', space=sflag, size = 0x4, scoped, tag = 'scoped memory for run.1']
    #allocation22 [shape = 'u8[1024]{0}', space=vmem, size = 0x400, scoped, tag = 'input window, operand 12, single buffered']
    #allocation23 [shape = 'u8[2048]{0}', space=vmem, size = 0x800, scoped, tag = 'input window, operand 13, single buffered']
    #allocation24 [shape = 's32[1]{0}', space=sflag, size = 0x4, scoped, tag = 'scoped memory for run.1']
    #allocation25 [shape = 'u8[4096]{0}', space=vmem, size = 0x1000, scoped, tag = 'output window, operand 0']
    %19 = vsyncpa [#allocation3], 0
    %s20 = scalar_lea.sflag [#allocation3], 1
    %21 = vsyncpa %s20, 0
    %22 = vsyncpa [#allocation6], 0
    %s23 = scalar_lea.sflag [#allocation6], 1
    %24 = vsyncpa %s23, 0
    %25 = vsyncpa [#allocation9], 0
    %s26 = scalar_lea.sflag [#allocation9], 1
    %27 = vsyncpa %s26, 0
    %28 = vsyncpa [#allocation12], 0
    %29 = vsyncpa [#allocation15], 0
    %30 = vsyncpa [#allocation18], 0
    %31 = vsyncpa [#allocation21], 0
    %32 = vsyncpa [#allocation24], 0
    %33 = vsyncpa [#allocation4], 0
    %s34 = scalar_lea.sflag [#allocation4], 1
    %35 = vsyncpa %s34, 0
    loop: start=0, step=1, limit=4
    $region2: #{run.1} parent=1 // loop_pre_header
      _
    $region3: #{run.1} parent=1 // loop_header
      %s37 = sphi 0, %s41
      %p38 = scmp.ge.s32.totalorder %s37, 4
      %s44 = sphi 0, %s56
      %s45 = sphi 0, %s52
      %s46 = sphi 0, %s44
      %s47 = sphi 0, %s45
      %s48 = sphi 0, %s46
      %s49 = sphi 0, %s47
      %s61 = sphi 0, %s63
      %s64 = sphi 0, %s61
      %s65 = sphi 0, %s64
      %s81 = sphi 0, %s65
      %s87 = sphi 0, %s89
      %s90 = sphi 0, %s87
      %s91 = sphi 0, %s90
      %s107 = sphi 0, %s91
      %s113 = sphi 0, %s115
      %s116 = sphi 0, %s113
      %s117 = sphi 0, %s116
      %s133 = sphi 0, %s117
      %s139 = sphi 0, %s141
      %s142 = sphi 0, %s139
      %s143 = sphi 0, %s142
      %s159 = sphi 0, %s143
      %s165 = sphi 0, %s167
      %s168 = sphi 0, %s165
      %s169 = sphi 0, %s168
      %s185 = sphi 0, %s169
      %s189 = sphi 0, %s189
      %s191 = sphi 0, %s189
      %s192 = sphi 0, %s191
      %s206 = sphi 0, %s192
      %s210 = sphi 0, %s210
      %s212 = sphi 0, %s210
      %s213 = sphi 0, %s212
      %s227 = sphi 0, %s213
      %s231 = sphi 0, %s231
      %s233 = sphi 0, %s231
      %s234 = sphi 0, %s233
      %s248 = sphi 0, %s234
      %s252 = sphi 0, %s252
      %s254 = sphi 0, %s252
      %s255 = sphi 0, %s254
      %s269 = sphi 0, %s255
      %s273 = sphi 0, %s273
      %s275 = sphi 0, %s273
      %s276 = sphi 0, %s275
      %s290 = sphi 0, %s276
      %s294 = sphi 0, %s294
      %s296 = sphi 0, %s294
      %s297 = sphi 0, %s296
      %s311 = sphi 0, %s297
      %s315 = sphi 0, %s315
      %s317 = sphi 0, %s315
      %s318 = sphi 0, %s317
      %s332 = sphi 0, %s318
      %s336 = sphi 0, %s336
      %s338 = sphi 0, %s336
      %s339 = sphi 0, %s338
      %s353 = sphi 0, %s339
      %s357 = sphi 0, %s357
      %s359 = sphi 0, %s357
      %s360 = sphi 0, %s359
      %s374 = sphi 0, %s360
      %s382 = sphi 0, %s384
      %s385 = sphi 0, %s382
      %s386 = sphi 0, %s385
      %s402 = sphi 0, %s386
    $region4: #{run.1} parent=1 // loop_header_branch
      %40 = sbr.rel (%p38) target = $region8
    $region5: #{run.1} parent=1 // loop_body
      %s42 = ssub.s32 %s37, 1
      %s43 = ssub.s32 %s37, 2
      %s50 = sadd.s32 1, %s45
      %p51 = scmp.ge.s32.totalorder %s50, 1
      %s52 = scalar_select %p51, 0, %s50
      %s53 = sadd.s32 1, %s44
      %s54 = scalar_select %p51, %s53, %s44
      %p55 = scmp.ge.s32.totalorder %s54, 2
      %s56 = scalar_select %p55, 0, %s54
      %s57 = ssub.s32 %s44, %s56
      %s58 = ssub.s32 %s45, %s52
      %s59 = sor.u32 %s57, %s58
      %p60 = scmp.eq.s32.totalorder %s59, 0
      %s62 = sadd.s32 %s61, 1
      %s63 = scalar_select %p60, %s61, %s62
      %p66 = pneg %p60
      %p67 = scmp.eq.s32.totalorder %s37, 1
      %p68 = por %p66, %p67
      %p69 = scmp.ne.s32.totalorder %s61, %s64
      %p70 = scmp.eq.s32.totalorder %s37, 0
      %p71 = por %p69, %p70
      %p72 = scmp.ne.s32.totalorder %s61, %s64
      %p73 = scmp.eq.s32.totalorder %s42, 1
      %p74 = por %p72, %p73
      %p75 = scmp.ne.s32.totalorder %s64, %s65
      %p76 = scmp.eq.s32.totalorder %s42, 0
      %p77 = por %p75, %p76
      %p78 = scmp.ne.s32.totalorder %s64, %s65
      %p79 = scmp.eq.s32.totalorder %s43, 1
      %p80 = por %p78, %p79
      %p82 = scmp.ne.s32.totalorder %s65, %s81
      %p83 = scmp.eq.s32.totalorder %s43, 0
      %p84 = por %p82, %p83
      %s85 = ssub.s32 %s44, %s56
      %p86 = scmp.eq.s32.totalorder %s85, 0
      %s88 = sadd.s32 %s87, 1
      %s89 = scalar_select %p86, %s87, %s88
      %p92 = pneg %p86
      %p93 = scmp.eq.s32.totalorder %s37, 1
      %p94 = por %p92, %p93
      %p95 = scmp.ne.s32.totalorder %s87, %s90
      %p96 = scmp.eq.s32.totalorder %s37, 0
      %p97 = por %p95, %p96
      %p98 = scmp.ne.s32.totalorder %s87, %s90
      %p99 = scmp.eq.s32.totalorder %s42, 1
      %p100 = por %p98, %p99
      %p101 = scmp.ne.s32.totalorder %s90, %s91
      %p102 = scmp.eq.s32.totalorder %s42, 0
      %p103 = por %p101, %p102
      %p104 = scmp.ne.s32.totalorder %s90, %s91
      %p105 = scmp.eq.s32.totalorder %s43, 1
      %p106 = por %p104, %p105
      %p108 = scmp.ne.s32.totalorder %s91, %s107
      %p109 = scmp.eq.s32.totalorder %s43, 0
      %p110 = por %p108, %p109
      %s111 = ssub.s32 %s44, %s56
      %p112 = scmp.eq.s32.totalorder %s111, 0
      %s114 = sadd.s32 %s113, 1
      %s115 = scalar_select %p112, %s113, %s114
      %p118 = pneg %p112
      %p119 = scmp.eq.s32.totalorder %s37, 1
      %p120 = por %p118, %p119
      %p121 = scmp.ne.s32.totalorder %s113, %s116
      %p122 = scmp.eq.s32.totalorder %s37, 0
      %p123 = por %p121, %p122
      %p124 = scmp.ne.s32.totalorder %s113, %s116
      %p125 = scmp.eq.s32.totalorder %s42, 1
      %p126 = por %p124, %p125
      %p127 = scmp.ne.s32.totalorder %s116, %s117
      %p128 = scmp.eq.s32.totalorder %s42, 0
      %p129 = por %p127, %p128
      %p130 = scmp.ne.s32.totalorder %s116, %s117
      %p131 = scmp.eq.s32.totalorder %s43, 1
      %p132 = por %p130, %p131
      %p134 = scmp.ne.s32.totalorder %s117, %s133
      %p135 = scmp.eq.s32.totalorder %s43, 0
      %p136 = por %p134, %p135
      %s137 = ssub.s32 %s44, %s56
      %p138 = scmp.eq.s32.totalorder %s137, 0
      %s140 = sadd.s32 %s139, 1
      %s141 = scalar_select %p138, %s139, %s140
      %p144 = pneg %p138
      %p145 = scmp.eq.s32.totalorder %s37, 1
      %p146 = por %p144, %p145
      %p147 = scmp.ne.s32.totalorder %s139, %s142
      %p148 = scmp.eq.s32.totalorder %s37, 0
      %p149 = por %p147, %p148
      %p150 = scmp.ne.s32.totalorder %s139, %s142
      %p151 = scmp.eq.s32.totalorder %s42, 1
      %p152 = por %p150, %p151
      %p153 = scmp.ne.s32.totalorder %s142, %s143
      %p154 = scmp.eq.s32.totalorder %s42, 0
      %p155 = por %p153, %p154
      %p156 = scmp.ne.s32.totalorder %s142, %s143
      %p157 = scmp.eq.s32.totalorder %s43, 1
      %p158 = por %p156, %p157
      %p160 = scmp.ne.s32.totalorder %s143, %s159
      %p161 = scmp.eq.s32.totalorder %s43, 0
      %p162 = por %p160, %p161
      %s163 = ssub.s32 %s44, %s56
      %p164 = scmp.eq.s32.totalorder %s163, 0
      %s166 = sadd.s32 %s165, 1
      %s167 = scalar_select %p164, %s165, %s166
      %p170 = pneg %p164
      %p171 = scmp.eq.s32.totalorder %s37, 1
      %p172 = por %p170, %p171
      %p173 = scmp.ne.s32.totalorder %s165, %s168
      %p174 = scmp.eq.s32.totalorder %s37, 0
      %p175 = por %p173, %p174
      %p176 = scmp.ne.s32.totalorder %s165, %s168
      %p177 = scmp.eq.s32.totalorder %s42, 1
      %p178 = por %p176, %p177
      %p179 = scmp.ne.s32.totalorder %s168, %s169
      %p180 = scmp.eq.s32.totalorder %s42, 0
      %p181 = por %p179, %p180
      %p182 = scmp.ne.s32.totalorder %s168, %s169
      %p183 = scmp.eq.s32.totalorder %s43, 1
      %p184 = por %p182, %p183
      %p186 = scmp.ne.s32.totalorder %s169, %s185
      %p187 = scmp.eq.s32.totalorder %s43, 0
      %p188 = por %p186, %p187
      %s190 = sadd.s32 %s189, 1
      %p193 = scmp.eq.s32.totalorder %s37, 1
      %p194 = scmp.ne.s32.totalorder %s189, %s191
      %p195 = scmp.eq.s32.totalorder %s37, 0
      %p196 = por %p194, %p195
      %p197 = scmp.ne.s32.totalorder %s189, %s191
      %p198 = scmp.eq.s32.totalorder %s42, 1
      %p199 = por %p197, %p198
      %p200 = scmp.ne.s32.totalorder %s191, %s192
      %p201 = scmp.eq.s32.totalorder %s42, 0
      %p202 = por %p200, %p201
      %p203 = scmp.ne.s32.totalorder %s191, %s192
      %p204 = scmp.eq.s32.totalorder %s43, 1
      %p205 = por %p203, %p204
      %p207 = scmp.ne.s32.totalorder %s192, %s206
      %p208 = scmp.eq.s32.totalorder %s43, 0
      %p209 = por %p207, %p208
      %s211 = sadd.s32 %s210, 1
      %p214 = scmp.eq.s32.totalorder %s37, 1
      %p215 = scmp.ne.s32.totalorder %s210, %s212
      %p216 = scmp.eq.s32.totalorder %s37, 0
      %p217 = por %p215, %p216
      %p218 = scmp.ne.s32.totalorder %s210, %s212
      %p219 = scmp.eq.s32.totalorder %s42, 1
      %p220 = por %p218, %p219
      %p221 = scmp.ne.s32.totalorder %s212, %s213
      %p222 = scmp.eq.s32.totalorder %s42, 0
      %p223 = por %p221, %p222
      %p224 = scmp.ne.s32.totalorder %s212, %s213
      %p225 = scmp.eq.s32.totalorder %s43, 1
      %p226 = por %p224, %p225
      %p228 = scmp.ne.s32.totalorder %s213, %s227
      %p229 = scmp.eq.s32.totalorder %s43, 0
      %p230 = por %p228, %p229
      %s232 = sadd.s32 %s231, 1
      %p235 = scmp.eq.s32.totalorder %s37, 1
      %p236 = scmp.ne.s32.totalorder %s231, %s233
      %p237 = scmp.eq.s32.totalorder %s37, 0
      %p238 = por %p236, %p237
      %p239 = scmp.ne.s32.totalorder %s231, %s233
      %p240 = scmp.eq.s32.totalorder %s42, 1
      %p241 = por %p239, %p240
      %p242 = scmp.ne.s32.totalorder %s233, %s234
      %p243 = scmp.eq.s32.totalorder %s42, 0
      %p244 = por %p242, %p243
      %p245 = scmp.ne.s32.totalorder %s233, %s234
      %p246 = scmp.eq.s32.totalorder %s43, 1
      %p247 = por %p245, %p246
      %p249 = scmp.ne.s32.totalorder %s234, %s248
      %p250 = scmp.eq.s32.totalorder %s43, 0
      %p251 = por %p249, %p250
      %s253 = sadd.s32 %s252, 1
      %p256 = scmp.eq.s32.totalorder %s37, 1
      %p257 = scmp.ne.s32.totalorder %s252, %s254
      %p258 = scmp.eq.s32.totalorder %s37, 0
      %p259 = por %p257, %p258
      %p260 = scmp.ne.s32.totalorder %s252, %s254
      %p261 = scmp.eq.s32.totalorder %s42, 1
      %p262 = por %p260, %p261
      %p263 = scmp.ne.s32.totalorder %s254, %s255
      %p264 = scmp.eq.s32.totalorder %s42, 0
      %p265 = por %p263, %p264
      %p266 = scmp.ne.s32.totalorder %s254, %s255
      %p267 = scmp.eq.s32.totalorder %s43, 1
      %p268 = por %p266, %p267
      %p270 = scmp.ne.s32.totalorder %s255, %s269
      %p271 = scmp.eq.s32.totalorder %s43, 0
      %p272 = por %p270, %p271
      %s274 = sadd.s32 %s273, 1
      %p277 = scmp.eq.s32.totalorder %s37, 1
      %p278 = scmp.ne.s32.totalorder %s273, %s275
      %p279 = scmp.eq.s32.totalorder %s37, 0
      %p280 = por %p278, %p279
      %p281 = scmp.ne.s32.totalorder %s273, %s275
      %p282 = scmp.eq.s32.totalorder %s42, 1
      %p283 = por %p281, %p282
      %p284 = scmp.ne.s32.totalorder %s275, %s276
      %p285 = scmp.eq.s32.totalorder %s42, 0
      %p286 = por %p284, %p285
      %p287 = scmp.ne.s32.totalorder %s275, %s276
      %p288 = scmp.eq.s32.totalorder %s43, 1
      %p289 = por %p287, %p288
      %p291 = scmp.ne.s32.totalorder %s276, %s290
      %p292 = scmp.eq.s32.totalorder %s43, 0
      %p293 = por %p291, %p292
      %s295 = sadd.s32 %s294, 1
      %p298 = scmp.eq.s32.totalorder %s37, 1
      %p299 = scmp.ne.s32.totalorder %s294, %s296
      %p300 = scmp.eq.s32.totalorder %s37, 0
      %p301 = por %p299, %p300
      %p302 = scmp.ne.s32.totalorder %s294, %s296
      %p303 = scmp.eq.s32.totalorder %s42, 1
      %p304 = por %p302, %p303
      %p305 = scmp.ne.s32.totalorder %s296, %s297
      %p306 = scmp.eq.s32.totalorder %s42, 0
      %p307 = por %p305, %p306
      %p308 = scmp.ne.s32.totalorder %s296, %s297
      %p309 = scmp.eq.s32.totalorder %s43, 1
      %p310 = por %p308, %p309
      %p312 = scmp.ne.s32.totalorder %s297, %s311
      %p313 = scmp.eq.s32.totalorder %s43, 0
      %p314 = por %p312, %p313
      %s316 = sadd.s32 %s315, 1
      %p319 = scmp.eq.s32.totalorder %s37, 1
      %p320 = scmp.ne.s32.totalorder %s315, %s317
      %p321 = scmp.eq.s32.totalorder %s37, 0
      %p322 = por %p320, %p321
      %p323 = scmp.ne.s32.totalorder %s315, %s317
      %p324 = scmp.eq.s32.totalorder %s42, 1
      %p325 = por %p323, %p324
      %p326 = scmp.ne.s32.totalorder %s317, %s318
      %p327 = scmp.eq.s32.totalorder %s42, 0
      %p328 = por %p326, %p327
      %p329 = scmp.ne.s32.totalorder %s317, %s318
      %p330 = scmp.eq.s32.totalorder %s43, 1
      %p331 = por %p329, %p330
      %p333 = scmp.ne.s32.totalorder %s318, %s332
      %p334 = scmp.eq.s32.totalorder %s43, 0
      %p335 = por %p333, %p334
      %s337 = sadd.s32 %s336, 1
      %p340 = scmp.eq.s32.totalorder %s37, 1
      %p341 = scmp.ne.s32.totalorder %s336, %s338
      %p342 = scmp.eq.s32.totalorder %s37, 0
      %p343 = por %p341, %p342
      %p344 = scmp.ne.s32.totalorder %s336, %s338
      %p345 = scmp.eq.s32.totalorder %s42, 1
      %p346 = por %p344, %p345
      %p347 = scmp.ne.s32.totalorder %s338, %s339
      %p348 = scmp.eq.s32.totalorder %s42, 0
      %p349 = por %p347, %p348
      %p350 = scmp.ne.s32.totalorder %s338, %s339
      %p351 = scmp.eq.s32.totalorder %s43, 1
      %p352 = por %p350, %p351
      %p354 = scmp.ne.s32.totalorder %s339, %s353
      %p355 = scmp.eq.s32.totalorder %s43, 0
      %p356 = por %p354, %p355
      %s358 = sadd.s32 %s357, 1
      %p361 = scmp.eq.s32.totalorder %s37, 1
      %p362 = scmp.ne.s32.totalorder %s357, %s359
      %p363 = scmp.eq.s32.totalorder %s37, 0
      %p364 = por %p362, %p363
      %p365 = scmp.ne.s32.totalorder %s357, %s359
      %p366 = scmp.eq.s32.totalorder %s42, 1
      %p367 = por %p365, %p366
      %p368 = scmp.ne.s32.totalorder %s359, %s360
      %p369 = scmp.eq.s32.totalorder %s42, 0
      %p370 = por %p368, %p369
      %p371 = scmp.ne.s32.totalorder %s359, %s360
      %p372 = scmp.eq.s32.totalorder %s43, 1
      %p373 = por %p371, %p372
      %p375 = scmp.ne.s32.totalorder %s360, %s374
      %p376 = scmp.eq.s32.totalorder %s43, 0
      %p377 = por %p375, %p376
      %s378 = ssub.s32 %s44, %s56
      %s379 = ssub.s32 %s45, %s52
      %s380 = sor.u32 %s378, %s379
      %p381 = scmp.eq.s32.totalorder %s380, 0
      %s383 = sadd.s32 %s382, 1
      %s384 = scalar_select %p381, %s382, %s383
      %p387 = pneg %p381
      %p388 = scmp.eq.s32.totalorder %s37, 1
      %p389 = por %p387, %p388
      %p390 = scmp.ne.s32.totalorder %s382, %s385
      %p391 = scmp.eq.s32.totalorder %s37, 0
      %p392 = por %p390, %p391
      %p393 = scmp.ne.s32.totalorder %s382, %s385
      %p394 = scmp.eq.s32.totalorder %s42, 1
      %p395 = por %p393, %p394
      %p396 = scmp.ne.s32.totalorder %s385, %s386
      %p397 = scmp.eq.s32.totalorder %s42, 0
      %p398 = por %p396, %p397
      %p399 = scmp.ne.s32.totalorder %s385, %s386
      %p400 = scmp.eq.s32.totalorder %s43, 1
      %p401 = por %p399, %p400
      %p403 = scmp.ne.s32.totalorder %s386, %s402
      %p404 = scmp.eq.s32.totalorder %s43, 0
      %p405 = por %p403, %p404
      %p406 = scmp.le.s32.totalorder 1, %s37
      %p407 = scmp.lt.s32.totalorder %s37, 3
      %p408 = pnand %p406, %p407
      %p409 = pneg %p408
      // Predicated region
      $region9: #{run.1} parent=5 // pred_check
        _
      $region10: #{run.1} parent=5 // pred_check_branch
        %411 = sbr.rel (%p408) target = $region12
      $region11: #{run.1} parent=5 // pred_region
        %s412 = ssub.s32 %s37, 1
        // Predicated region
        $region13: #{run.1} parent=11 // pred_check
          %p413 = pneg %p202
        $region14: #{run.1} parent=11 // pred_check_branch
          %415 = sbr.rel (%p413) target = $region16
        $region15: #{run.1} parent=11 // pred_region
          %s417 = ssub.s32 256, 256
          %418 = vsyncadd [#allocation12], %s417
          %s419 = sshll.u32 [#allocation11], 4
          %s420 = int_to_ptr.vmem [resolvable:$true] %s419
          %425 = dma.hbm_to_vmem [thread:$0]  %s5, 256, %s420, [#allocation12], 64, 64, 4
        $region16: #{run.1} parent=11 // pred_fallthru
          _
        // Predicated region
        $region17: #{run.1} parent=11 // pred_check
          %p426 = pneg %p223
        $region18: #{run.1} parent=11 // pred_check_branch
          %428 = sbr.rel (%p426) target = $region20
        $region19: #{run.1} parent=11 // pred_region
          %s430 = ssub.s32 256, 256
          %431 = vsyncadd [#allocation12], %s430
          %s432 = sshll.u32 [#allocation13], 4
          %s433 = int_to_ptr.vmem [resolvable:$true] %s432
          %438 = dma.hbm_to_vmem [thread:$0]  %s6, 256, %s433, [#allocation12], 64, 64, 4
        $region20: #{run.1} parent=11 // pred_fallthru
          _
        // Predicated region
        $region21: #{run.1} parent=11 // pred_check
          %p439 = pneg %p244
        $region22: #{run.1} parent=11 // pred_check_branch
          %441 = sbr.rel (%p439) target = $region24
        $region23: #{run.1} parent=11 // pred_region
          %s443 = ssub.s32 512, 512
          %444 = vsyncadd [#allocation15], %s443
          %s445 = sshll.u32 [#allocation14], 4
          %s446 = int_to_ptr.vmem [resolvable:$true] %s445
          %451 = dma.hbm_to_vmem [thread:$0]  %s7, 512, %s446, [#allocation15], 128, 128, 8
        $region24: #{run.1} parent=11 // pred_fallthru
          _
        // Predicated region
        $region25: #{run.1} parent=11 // pred_check
          %p452 = pneg %p265
        $region26: #{run.1} parent=11 // pred_check_branch
          %454 = sbr.rel (%p452) target = $region28
        $region27: #{run.1} parent=11 // pred_region
          %s456 = ssub.s32 512, 512
          %457 = vsyncadd [#allocation15], %s456
          %s458 = sshll.u32 [#allocation16], 4
          %s459 = int_to_ptr.vmem [resolvable:$true] %s458
          %464 = dma.hbm_to_vmem [thread:$0]  %s8, 512, %s459, [#allocation15], 64, 64, 4
        $region28: #{run.1} parent=11 // pred_fallthru
          _
        // Predicated region
        $region29: #{run.1} parent=11 // pred_check
          %p465 = pneg %p286
        $region30: #{run.1} parent=11 // pred_check_branch
          %467 = sbr.rel (%p465) target = $region32
        $region31: #{run.1} parent=11 // pred_region
          %s469 = ssub.s32 1024, 1024
          %470 = vsyncadd [#allocation18], %s469
          %s471 = sshll.u32 [#allocation17], 4
          %s472 = int_to_ptr.vmem [resolvable:$true] %s471
          %477 = dma.hbm_to_vmem [thread:$0]  %s9, 1024, %s472, [#allocation18], 128, 128, 8
        $region32: #{run.1} parent=11 // pred_fallthru
          _
        // Predicated region
        $region33: #{run.1} parent=11 // pred_check
          %p478 = pneg %p307
        $region34: #{run.1} parent=11 // pred_check_branch
          %480 = sbr.rel (%p478) target = $region36
        $region35: #{run.1} parent=11 // pred_region
          %s482 = ssub.s32 256, 256
          %483 = vsyncadd [#allocation18], %s482
          %s484 = sshll.u32 [#allocation19], 4
          %s485 = int_to_ptr.vmem [resolvable:$true] %s484
          %490 = dma.hbm_to_vmem [thread:$0]  %s10, 256, %s485, [#allocation18], 64, 64, 4
        $region36: #{run.1} parent=11 // pred_fallthru
          _
        // Predicated region
        $region37: #{run.1} parent=11 // pred_check
          %p491 = pneg %p328
        $region38: #{run.1} parent=11 // pred_check_branch
          %493 = sbr.rel (%p491) target = $region40
        $region39: #{run.1} parent=11 // pred_region
          %s495 = ssub.s32 512, 512
          %496 = vsyncadd [#allocation21], %s495
          %s497 = sshll.u32 [#allocation20], 4
          %s498 = int_to_ptr.vmem [resolvable:$true] %s497
          %503 = dma.hbm_to_vmem [thread:$0]  %s11, 512, %s498, [#allocation21], 128, 128, 8
        $region40: #{run.1} parent=11 // pred_fallthru
          _
        // Predicated region
        $region41: #{run.1} parent=11 // pred_check
          %p504 = pneg %p349
        $region42: #{run.1} parent=11 // pred_check_branch
          %506 = sbr.rel (%p504) target = $region44
        $region43: #{run.1} parent=11 // pred_region
          %s508 = ssub.s32 32, 32
          %509 = vsyncadd [#allocation21], %s508
          %s511 = sshll.u32 [#allocation22], 4
          %s512 = int_to_ptr.vmem [resolvable:$true] %s511
          %514 = dma.hbm_to_vmem [thread:$0]  %s12, 32, %s512, [#allocation21]
        $region44: #{run.1} parent=11 // pred_fallthru
          _
        // Predicated region
        $region45: #{run.1} parent=11 // pred_check
          %p515 = pneg %p370
        $region46: #{run.1} parent=11 // pred_check_branch
          %517 = sbr.rel (%p515) target = $region48
        $region47: #{run.1} parent=11 // pred_region
          %s519 = ssub.s32 64, 64
          %520 = vsyncadd [#allocation24], %s519
          %s522 = sshll.u32 [#allocation23], 4
          %s523 = int_to_ptr.vmem [resolvable:$true] %s522
          %525 = dma.hbm_to_vmem [thread:$0]  %s13, 64, %s523, [#allocation24]
        $region48: #{run.1} parent=11 // pred_fallthru
          _
      $region12: #{run.1} parent=5 // pred_fallthru
        _
      %p526 = scmp.lt.s32.totalorder %s37, 2
      // Predicated region
      $region49: #{run.1} parent=5 // pred_check
        %p527 = pneg %p526
      $region50: #{run.1} parent=5 // pred_check_branch
        %529 = sbr.rel (%p527) target = $region52
      $region51: #{run.1} parent=5 // pred_region
        // Predicated region
        $region53: #{run.1} parent=51 // pred_check
          %p530 = pneg %p71
        $region54: #{run.1} parent=51 // pred_check_branch
          %532 = sbr.rel (%p530) target = $region56
        $region55: #{run.1} parent=51 // pred_region
          %s533 = sand.u32 %s61, 1
          %s534 = scalar_lea.sflag [#allocation3], %s533
          %s535 = sand.u32 %s61, 1
          %s536 = smul.addr %s535, 8
          %s537 = scalar_lea.vmem [#allocation2], %s536
          %s539 = ssub.s32 128, 128
          %540 = vsyncadd %s534, %s539
          %s541 = sadd.s32 %s45, %s44
          %s542 = smul.addr %s541, 128
          %s543 = scalar_lea.hbm %s0, %s542
          %s545 = sshll.u32 %s537, 4
          %s546 = int_to_ptr.vmem [resolvable:$true] %s545
          %548 = dma.hbm_to_vmem [thread:$0]  %s543, 128, %s546, %s534
        $region56: #{run.1} parent=51 // pred_fallthru
          _
        // Predicated region
        $region57: #{run.1} parent=51 // pred_check
          %p549 = pneg %p97
        $region58: #{run.1} parent=51 // pred_check_branch
          %551 = sbr.rel (%p549) target = $region60
        $region59: #{run.1} parent=51 // pred_region
          %s552 = sand.u32 %s37, 1
          %s553 = scalar_lea.sflag [#allocation6], %s552
          %s554 = sand.u32 %s87, 1
          %s555 = smul.addr %s554, 32
          %s556 = scalar_lea.vmem [#allocation5], %s555
          %s558 = ssub.s32 512, 512
          %559 = vsyncadd %s553, %s558
          %s560 = smul.addr %s44, 4
          %s561 = smul.addr %s560, 128
          %s562 = scalar_lea.hbm %s1, %s561
          %s563 = sshll.u32 %s556, 4
          %s564 = int_to_ptr.vmem [resolvable:$true] %s563
          %569 = dma.hbm_to_vmem [thread:$0]  %s562, 512, %s564, %s553, 128, 128, 8
        $region60: #{run.1} parent=51 // pred_fallthru
          _
        // Predicated region
        $region61: #{run.1} parent=51 // pred_check
          %p570 = pneg %p123
        $region62: #{run.1} parent=51 // pred_check_branch
          %572 = sbr.rel (%p570) target = $region64
        $region63: #{run.1} parent=51 // pred_region
          %s573 = sand.u32 %s37, 1
          %s574 = scalar_lea.sflag [#allocation6], %s573
          %s575 = sand.u32 %s113, 1
          %s576 = smul.addr %s575, 8
          %s577 = scalar_lea.vmem [#allocation7], %s576
          %s579 = ssub.s32 128, 128
          %580 = vsyncadd %s574, %s579
          %s581 = smul.addr %s44, 2
          %s582 = smul.addr %s581, 64
          %s583 = scalar_lea.hbm %s2, %s582
          %s584 = sshll.u32 %s577, 4
          %s585 = int_to_ptr.vmem [resolvable:$true] %s584
          %590 = dma.hbm_to_vmem [thread:$0]  %s583, 128, %s585, %s574, 64, 64, 4
        $region64: #{run.1} parent=51 // pred_fallthru
          _
        // Predicated region
        $region65: #{run.1} parent=51 // pred_check
          %p591 = pneg %p149
        $region66: #{run.1} parent=51 // pred_check_branch
          %593 = sbr.rel (%p591) target = $region68
        $region67: #{run.1} parent=51 // pred_region
          %s594 = sand.u32 %s37, 1
          %s595 = scalar_lea.sflag [#allocation9], %s594
          %s596 = sand.u32 %s139, 1
          %s597 = smul.addr %s596, 16
          %s598 = scalar_lea.vmem [#allocation8], %s597
          %s600 = ssub.s32 256, 256
          %601 = vsyncadd %s595, %s600
          %s602 = smul.addr %s44, 4
          %s603 = smul.addr %s602, 64
          %s604 = scalar_lea.hbm %s3, %s603
          %s605 = sshll.u32 %s598, 4
          %s606 = int_to_ptr.vmem [resolvable:$true] %s605
          %611 = dma.hbm_to_vmem [thread:$0]  %s604, 256, %s606, %s595, 64, 64, 4
        $region68: #{run.1} parent=51 // pred_fallthru
          _
        // Predicated region
        $region69: #{run.1} parent=51 // pred_check
          %p612 = pneg %p175
        $region70: #{run.1} parent=51 // pred_check_branch
          %614 = sbr.rel (%p612) target = $region72
        $region71: #{run.1} parent=51 // pred_region
          %s615 = sand.u32 %s37, 1
          %s616 = scalar_lea.sflag [#allocation9], %s615
          %s617 = sand.u32 %s165, 1
          %s618 = smul.addr %s617, 16
          %s619 = scalar_lea.vmem [#allocation10], %s618
          %s621 = ssub.s32 256, 256
          %622 = vsyncadd %s616, %s621
          %s623 = smul.addr %s44, 2
          %s624 = smul.addr %s623, 128
          %s625 = scalar_lea.hbm %s4, %s624
          %s626 = sshll.u32 %s619, 4
          %s627 = int_to_ptr.vmem [resolvable:$true] %s626
          %632 = dma.hbm_to_vmem [thread:$0]  %s625, 256, %s627, %s616, 128, 128, 8
        $region72: #{run.1} parent=51 // pred_fallthru
          _
      $region52: #{run.1} parent=5 // pred_fallthru
        _
      %p633 = scmp.le.s32.totalorder 1, %s37
      %p634 = scmp.lt.s32.totalorder %s37, 3
      %p635 = pnand %p633, %p634
      %p636 = pneg %p635
      // Predicated region
      $region73: #{run.1} parent=5 // pred_check
        _
      $region74: #{run.1} parent=5 // pred_check_branch
        %638 = sbr.rel (%p635) target = $region76
      $region75: #{run.1} parent=5 // pred_region
        %s639 = ssub.s32 %s37, 1
        %s640 = sand.u32 %s64, 1
        %s641 = scalar_lea.sflag [#allocation3], %s640
        %s642 = sand.u32 %s64, 1
        %s643 = smul.addr %s642, 8
        %s644 = scalar_lea.vmem [#allocation2], %s643
        // Predicated region
        $region77: #{run.1} parent=75 // pred_check
          %p645 = pneg %p77
        $region78: #{run.1} parent=75 // pred_check_branch
          %647 = sbr.rel (%p645) target = $region80
        $region79: #{run.1} parent=75 // pred_region
          %648 = dma.done %s641, 128
        $region80: #{run.1} parent=75 // pred_fallthru
          _
        %s649 = sand.u32 %s42, 1
        %s650 = scalar_lea.sflag [#allocation6], %s649
        %s651 = sand.u32 %s90, 1
        %s652 = smul.addr %s651, 32
        %s653 = scalar_lea.vmem [#allocation5], %s652
        // Predicated region
        $region81: #{run.1} parent=75 // pred_check
          %p654 = pneg %p103
        $region82: #{run.1} parent=75 // pred_check_branch
          %656 = sbr.rel (%p654) target = $region84
        $region83: #{run.1} parent=75 // pred_region
          %657 = dma.done %s650, 512
        $region84: #{run.1} parent=75 // pred_fallthru
          _
        %s658 = sand.u32 %s42, 1
        %s659 = scalar_lea.sflag [#allocation6], %s658
        %s660 = sand.u32 %s116, 1
        %s661 = smul.addr %s660, 8
        %s662 = scalar_lea.vmem [#allocation7], %s661
        // Predicated region
        $region85: #{run.1} parent=75 // pred_check
          %p663 = pneg %p129
        $region86: #{run.1} parent=75 // pred_check_branch
          %665 = sbr.rel (%p663) target = $region88
        $region87: #{run.1} parent=75 // pred_region
          %666 = dma.done %s659, 128
        $region88: #{run.1} parent=75 // pred_fallthru
          _
        %s667 = sand.u32 %s42, 1
        %s668 = scalar_lea.sflag [#allocation9], %s667
        %s669 = sand.u32 %s142, 1
        %s670 = smul.addr %s669, 16
        %s671 = scalar_lea.vmem [#allocation8], %s670
        // Predicated region
        $region89: #{run.1} parent=75 // pred_check
          %p672 = pneg %p155
        $region90: #{run.1} parent=75 // pred_check_branch
          %674 = sbr.rel (%p672) target = $region92
        $region91: #{run.1} parent=75 // pred_region
          %675 = dma.done %s668, 256
        $region92: #{run.1} parent=75 // pred_fallthru
          _
        %s676 = sand.u32 %s42, 1
        %s677 = scalar_lea.sflag [#allocation9], %s676
        %s678 = sand.u32 %s168, 1
        %s679 = smul.addr %s678, 16
        %s680 = scalar_lea.vmem [#allocation10], %s679
        // Predicated region
        $region93: #{run.1} parent=75 // pred_check
          %p681 = pneg %p181
        $region94: #{run.1} parent=75 // pred_check_branch
          %683 = sbr.rel (%p681) target = $region96
        $region95: #{run.1} parent=75 // pred_region
          %684 = dma.done %s677, 256
        $region96: #{run.1} parent=75 // pred_fallthru
          _
        // Predicated region
        $region97: #{run.1} parent=75 // pred_check
          %p685 = pneg %p202
        $region98: #{run.1} parent=75 // pred_check_branch
          %687 = sbr.rel (%p685) target = $region100
        $region99: #{run.1} parent=75 // pred_region
          %688 = dma.done [#allocation12], 256
        $region100: #{run.1} parent=75 // pred_fallthru
          _
        // Predicated region
        $region101: #{run.1} parent=75 // pred_check
          %p689 = pneg %p223
        $region102: #{run.1} parent=75 // pred_check_branch
          %691 = sbr.rel (%p689) target = $region104
        $region103: #{run.1} parent=75 // pred_region
          %692 = dma.done [#allocation12], 256
        $region104: #{run.1} parent=75 // pred_fallthru
          _
        // Predicated region
        $region105: #{run.1} parent=75 // pred_check
          %p693 = pneg %p244
        $region106: #{run.1} parent=75 // pred_check_branch
          %695 = sbr.rel (%p693) target = $region108
        $region107: #{run.1} parent=75 // pred_region
          %696 = dma.done [#allocation15], 512
        $region108: #{run.1} parent=75 // pred_fallthru
          _
        // Predicated region
        $region109: #{run.1} parent=75 // pred_check
          %p697 = pneg %p265
        $region110: #{run.1} parent=75 // pred_check_branch
          %699 = sbr.rel (%p697) target = $region112
        $region111: #{run.1} parent=75 // pred_region
          %700 = dma.done [#allocation15], 512
        $region112: #{run.1} parent=75 // pred_fallthru
          _
        // Predicated region
        $region113: #{run.1} parent=75 // pred_check
          %p701 = pneg %p286
        $region114: #{run.1} parent=75 // pred_check_branch
          %703 = sbr.rel (%p701) target = $region116
        $region115: #{run.1} parent=75 // pred_region
          %704 = dma.done [#allocation18], 1024
        $region116: #{run.1} parent=75 // pred_fallthru
          _
        // Predicated region
        $region117: #{run.1} parent=75 // pred_check
          %p705 = pneg %p307
        $region118: #{run.1} parent=75 // pred_check_branch
          %707 = sbr.rel (%p705) target = $region120
        $region119: #{run.1} parent=75 // pred_region
          %708 = dma.done [#allocation18], 256
        $region120: #{run.1} parent=75 // pred_fallthru
          _
        // Predicated region
        $region121: #{run.1} parent=75 // pred_check
          %p709 = pneg %p328
        $region122: #{run.1} parent=75 // pred_check_branch
          %711 = sbr.rel (%p709) target = $region124
        $region123: #{run.1} parent=75 // pred_region
          %712 = dma.done [#allocation21], 512
        $region124: #{run.1} parent=75 // pred_fallthru
          _
        // Predicated region
        $region125: #{run.1} parent=75 // pred_check
          %p713 = pneg %p349
        $region126: #{run.1} parent=75 // pred_check_branch
          %715 = sbr.rel (%p713) target = $region128
        $region127: #{run.1} parent=75 // pred_region
          %716 = dma.done [#allocation21], 32
        $region128: #{run.1} parent=75 // pred_fallthru
          _
        // Predicated region
        $region129: #{run.1} parent=75 // pred_check
          %p717 = pneg %p370
        $region130: #{run.1} parent=75 // pred_check_branch
          %719 = sbr.rel (%p717) target = $region132
        $region131: #{run.1} parent=75 // pred_region
          %720 = dma.done [#allocation24], 64
        $region132: #{run.1} parent=75 // pred_fallthru
          _
        %s721 = sand.u32 %s64, 1
        %s722 = scalar_lea.sflag [#allocation3], %s721
        %s723 = sand.u32 %s64, 1
        %s724 = smul.addr %s723, 8
        %s725 = scalar_lea.vmem [#allocation2], %s724
        %p726 = pneg %p77
        %p727 = pneg %p74
        %s728 = sand.u32 %s42, 1
        %s729 = scalar_lea.sflag [#allocation6], %s728
        %s730 = sand.u32 %s90, 1
        %s731 = smul.addr %s730, 32
        %s732 = scalar_lea.vmem [#allocation5], %s731
        %p733 = pneg %p103
        %p734 = pneg %p100
        %s735 = sand.u32 %s42, 1
        %s736 = scalar_lea.sflag [#allocation6], %s735
        %s737 = sand.u32 %s116, 1
        %s738 = smul.addr %s737, 8
        %s739 = scalar_lea.vmem [#allocation7], %s738
        %p740 = pneg %p129
        %p741 = pneg %p126
        %s742 = sand.u32 %s42, 1
        %s743 = scalar_lea.sflag [#allocation9], %s742
        %s744 = sand.u32 %s142, 1
        %s745 = smul.addr %s744, 16
        %s746 = scalar_lea.vmem [#allocation8], %s745
        %p747 = pneg %p155
        %p748 = pneg %p152
        %s749 = sand.u32 %s42, 1
        %s750 = scalar_lea.sflag [#allocation9], %s749
        %s751 = sand.u32 %s168, 1
        %s752 = smul.addr %s751, 16
        %s753 = scalar_lea.vmem [#allocation10], %s752
        %p754 = pneg %p181
        %p755 = pneg %p178
        %p756 = pneg %p202
        %p757 = pneg %p199
        %p758 = pneg %p223
        %p759 = pneg %p220
        %p760 = pneg %p244
        %p761 = pneg %p241
        %p762 = pneg %p265
        %p763 = pneg %p262
        %p764 = pneg %p286
        %p765 = pneg %p283
        %p766 = pneg %p307
        %p767 = pneg %p304
        %p768 = pneg %p328
        %p769 = pneg %p325
        %p770 = pneg %p349
        %p771 = pneg %p346
        %p772 = pneg %p370
        %p773 = pneg %p367
        %p774 = pneg %p398
        %p775 = pneg %p395
        %s776 = sand.u32 %s385, 1
        %s777 = scalar_lea.sflag [#allocation4], %s776
        %s778 = sand.u32 %s385, 1
        %s779 = smul.addr %s778, 4
        %s780 = scalar_lea.vmem [#allocation25], %s779
        %v786 = vld [vmem:[%s644] sm:$0x3f]
        %v787 = vpack.c.bf16 %v786, %v786
        %v788 = vld [vmem:[#allocation11] sm:$0xf]
        %v789 = vld [vmem:[#allocation11 + $0x4] sm:$0xf]
        %v790 = vld [vmem:[#allocation11 + $0x8] sm:$0xf]
        %v791 = vld [vmem:[#allocation11 + $0xc] sm:$0xf]
        %v792 = vld [vmem:[%s653] sm:$0xff]
        %v793 = vld [vmem:[%s653 + $0x8] sm:$0xff]
        %v794 = vld [vmem:[%s653 + $0x10] sm:$0xff]
        %v795 = vld [vmem:[%s653 + $0x18] sm:$0xff]
        %797 = vset.pattern.permute.xlu0 0
        %798 = vperm.xlu0 %797, %v792
        %v799 = vpop.permute.xlu0 %798
        %802 = vset.pattern.permute.xlu0 0
        %803 = vperm.xlu0 %802, %v793
        %v804 = vpop.permute.xlu0 %803
        %807 = vset.pattern.permute.xlu0 0
        %808 = vperm.xlu0 %807, %v794
        %v809 = vpop.permute.xlu0 %808
        %812 = vset.pattern.permute.xlu0 0
        %813 = vperm.xlu0 %812, %v795
        %v814 = vpop.permute.xlu0 %813
        %v820 = vunpack.c.l.b16 %v788
        %v821 = vunpack.c.l.b16 %v789
        %v822 = vunpack.c.l.b16 %v790
        %v823 = vunpack.c.l.b16 %v791
        %v824 = vpack.c.b16 %v821, %v820
        %v825 = vpack.c.b16 %v823, %v822
        %vm826 = vcmask 48128
        %v828 = vsel %vm826, %v824, 0
        %v831 = vsel %vm826, %v825, 0
        %vm833 = vcmask 1042432
        %v835 = vsel %vm833, %v787, 0
        %837 = vmatprep.subr.bf16.mxu0 0
        %838 = vmatpush1.bf16.msra.mxu0 %v835
        %839 = vmatprep.subr.bf16.mxu0 0
        %840 = vmatpush1.bf16.msra.mxu0 0
        %841 = vmatprep.subr.bf16.mxu0 0
        %842 = vmatpush1.bf16.msra.mxu0 0
        %843 = vmatprep.subr.bf16.mxu0 0
        %844 = vmatpush1.bf16.msra.mxu0 0
        %845 = vmatprep.subr.bf16.mxu0 0
        %846 = vmatpush1.bf16.msra.mxu0 0
        %847 = vmatprep.subr.bf16.mxu0 0
        %848 = vmatpush1.bf16.msra.mxu0 0
        %849 = vmatprep.subr.bf16.mxu0 0
        %850 = vmatpush1.bf16.msra.mxu0 0
        %851 = vmatprep.subr.bf16.mxu0 0
        %852 = vmatpush1.bf16.msra.mxu0 0
        %853 = vmatprep.subr.bf16.mxu0 0
        %854 = vmatpush1.bf16.msra.mxu0 0
        %855 = vmatprep.subr.bf16.mxu0 0
        %856 = vmatpush1.bf16.msra.mxu0 0
        %857 = vmatprep.subr.bf16.mxu0 0
        %858 = vmatpush1.bf16.msra.mxu0 0
        %859 = vmatprep.subr.bf16.mxu0 0
        %860 = vmatpush1.bf16.msra.mxu0 0
        %861 = vmatprep.subr.bf16.mxu0 0
        %862 = vmatpush1.bf16.msra.mxu0 0
        %863 = vmatprep.subr.bf16.mxu0 0
        %864 = vmatpush1.bf16.msra.mxu0 0
        %865 = vmatprep.subr.bf16.mxu0 0
        %866 = vmatpush1.bf16.msra.mxu0 0
        %867 = vmatprep.subr.bf16.mxu0 0
        %868 = vmatpush1.bf16.msra.mxu0 0
        %869 = vmatprep.mubr.bf16.mxu0 0
        %870 = vmatmul.mubr.bf16.gmra.mrb[0].mxu0 %v828
        %v871 = vpop.f32.mrb[0].mxu0
        %v872 = vadd.f32 %v799, %v871
        %v873 = vpop.f32.mrb[0].mxu0
        %v874 = vpop.f32.mrb[0].mxu0
        %v875 = vadd.f32 %v804, %v874
        %v876 = vpop.f32.mrb[0].mxu0
        %877 = vmatprep.mubr.bf16.mxu0 0
        %878 = vmatmul.mubr.bf16.gmra.mrb[0].mxu0 %v831
        %v879 = vpop.f32.mrb[0].mxu0
        %v880 = vadd.f32 %v809, %v879
        %v881 = vpop.f32.mrb[0].mxu0
        %v882 = vpop.f32.mrb[0].mxu0
        %v883 = vadd.f32 %v814, %v882
        %v884 = vpop.f32.mrb[0].mxu0
        %885 = vdwg.mxu0
        %v886 = vld [vmem:[#allocation13] sm:$0xf]
        %v887 = vld [vmem:[#allocation13 + $0x4] sm:$0xf]
        %v888 = vld [vmem:[#allocation13 + $0x8] sm:$0xf]
        %v889 = vld [vmem:[#allocation13 + $0xc] sm:$0xf]
        %v890 = vpack.c.bf16 %v875, %v872
        %v891 = vpack.c.bf16 %v883, %v880
        %v892 = vld [vmem:[#allocation14] sm:$0xff]
        %v893 = vld [vmem:[#allocation14 + $0x8] sm:$0xff]
        %v894 = vld [vmem:[#allocation14 + $0x10] sm:$0xff]
        %v895 = vld [vmem:[#allocation14 + $0x18] sm:$0xff]
        %897 = vset.pattern.permute.xlu0 0
        %898 = vperm.xlu0 %897, %v892
        %v899 = vpop.permute.xlu0 %898
        %902 = vset.pattern.permute.xlu0 0
        %903 = vperm.xlu0 %902, %v893
        %v904 = vpop.permute.xlu0 %903
        %907 = vset.pattern.permute.xlu0 0
        %908 = vperm.xlu0 %907, %v894
        %v909 = vpop.permute.xlu0 %908
        %912 = vset.pattern.permute.xlu0 0
        %913 = vperm.xlu0 %912, %v895
        %v914 = vpop.permute.xlu0 %913
        %v920 = vunpack.c.l.b16 %v886
        %v921 = vunpack.c.l.b16 %v887
        %v922 = vunpack.c.l.b16 %v888
        %v923 = vunpack.c.l.b16 %v889
        %v924 = vpack.c.b16 %v921, %v920
        %v925 = vpack.c.b16 %v923, %v922
        %vm926 = vcmask 261120
        %v928 = vsel %vm926, %v924, 0
        %v931 = vsel %vm926, %v925, 0
        %933 = vmatprep.subr.bf16.mxu0 0
        %934 = vmatpush1.bf16.msra.mxu0 %v890
        %935 = vmatprep.subr.bf16.mxu0 0
        %936 = vmatpush1.bf16.msra.mxu0 %v891
        %937 = vmatprep.subr.bf16.mxu0 0
        %938 = vmatpush1.bf16.msra.mxu0 0
        %939 = vmatprep.subr.bf16.mxu0 0
        %940 = vmatpush1.bf16.msra.mxu0 0
        %941 = vmatprep.subr.bf16.mxu0 0
        %942 = vmatpush1.bf16.msra.mxu0 0
        %943 = vmatprep.subr.bf16.mxu0 0
        %944 = vmatpush1.bf16.msra.mxu0 0
        %945 = vmatprep.subr.bf16.mxu0 0
        %946 = vmatpush1.bf16.msra.mxu0 0
        %947 = vmatprep.subr.bf16.mxu0 0
        %948 = vmatpush1.bf16.msra.mxu0 0
        %949 = vmatprep.subr.bf16.mxu0 0
        %950 = vmatpush1.bf16.msra.mxu0 0
        %951 = vmatprep.subr.bf16.mxu0 0
        %952 = vmatpush1.bf16.msra.mxu0 0
        %953 = vmatprep.subr.bf16.mxu0 0
        %954 = vmatpush1.bf16.msra.mxu0 0
        %955 = vmatprep.subr.bf16.mxu0 0
        %956 = vmatpush1.bf16.msra.mxu0 0
        %957 = vmatprep.subr.bf16.mxu0 0
        %958 = vmatpush1.bf16.msra.mxu0 0
        %959 = vmatprep.subr.bf16.mxu0 0
        %960 = vmatpush1.bf16.msra.mxu0 0
        %961 = vmatprep.subr.bf16.mxu0 0
        %962 = vmatpush1.bf16.msra.mxu0 0
        %963 = vmatprep.subr.bf16.mxu0 0
        %964 = vmatpush1.bf16.msra.mxu0 0
        %965 = vmatprep.mubr.bf16.mxu0 0
        %966 = vmatmul.mubr.bf16.gmra.mrb[0].mxu0 %v928
        %v967 = vpop.f32.mrb[0].mxu0
        %v968 = vadd.f32 %v899, %v967
        %v969 = vpop.f32.mrb[0].mxu0
        %v970 = vpop.f32.mrb[0].mxu0
        %v971 = vadd.f32 %v904, %v970
        %v972 = vpop.f32.mrb[0].mxu0
        %973 = vmatprep.mubr.bf16.mxu0 0
        %974 = vmatmul.mubr.bf16.gmra.mrb[0].mxu0 %v931
        %v975 = vpop.f32.mrb[0].mxu0
        %v976 = vadd.f32 %v909, %v975
        %v977 = vpop.f32.mrb[0].mxu0
        %v978 = vpop.f32.mrb[0].mxu0
        %v979 = vadd.f32 %v914, %v978
        %v980 = vpop.f32.mrb[0].mxu0
        %981 = vdwg.mxu0
        %v982 = vld [vmem:[%s662] sm:$0xf]
        %v983 = vld [vmem:[%s662 + $0x4] sm:$0xf]
        %v984 = vpack.c.bf16 %v971, %v968
        %v985 = vpack.c.bf16 %v979, %v976
        %v986 = vld [vmem:[%s680] sm:$0xff]
        %v987 = vld [vmem:[%s680 + $0x8] sm:$0xff]
        %989 = vset.pattern.permute.xlu0 0
        %990 = vperm.xlu0 %989, %v986
        %v991 = vpop.permute.xlu0 %990
        %994 = vset.pattern.permute.xlu0 0
        %995 = vperm.xlu0 %994, %v987
        %v996 = vpop.permute.xlu0 %995
        %v1000 = vunpack.c.l.b16 %v982
        %v1001 = vunpack.c.l.b16 %v983
        %v1002 = vpack.c.b16 %v1001, %v1000
        %v1004 = vsel %vm926, %v1002, 0
        %1006 = vmatprep.subr.bf16.mxu0 0
        %1007 = vmatpush1.bf16.msra.mxu0 %v984
        %1008 = vmatprep.subr.bf16.mxu0 0
        %1009 = vmatpush1.bf16.msra.mxu0 %v985
        %1010 = vmatprep.subr.bf16.mxu0 0
        %1011 = vmatpush1.bf16.msra.mxu0 0
        %1012 = vmatprep.subr.bf16.mxu0 0
        %1013 = vmatpush1.bf16.msra.mxu0 0
        %1014 = vmatprep.subr.bf16.mxu0 0
        %1015 = vmatpush1.bf16.msra.mxu0 0
        %1016 = vmatprep.subr.bf16.mxu0 0
        %1017 = vmatpush1.bf16.msra.mxu0 0
        %1018 = vmatprep.subr.bf16.mxu0 0
        %1019 = vmatpush1.bf16.msra.mxu0 0
        %1020 = vmatprep.subr.bf16.mxu0 0
        %1021 = vmatpush1.bf16.msra.mxu0 0
        %1022 = vmatprep.subr.bf16.mxu0 0
        %1023 = vmatpush1.bf16.msra.mxu0 0
        %1024 = vmatprep.subr.bf16.mxu0 0
        %1025 = vmatpush1.bf16.msra.mxu0 0
        %1026 = vmatprep.subr.bf16.mxu0 0
        %1027 = vmatpush1.bf16.msra.mxu0 0
        %1028 = vmatprep.subr.bf16.mxu0 0
        %1029 = vmatpush1.bf16.msra.mxu0 0
        %1030 = vmatprep.subr.bf16.mxu0 0
        %1031 = vmatpush1.bf16.msra.mxu0 0
        %1032 = vmatprep.subr.bf16.mxu0 0
        %1033 = vmatpush1.bf16.msra.mxu0 0
        %1034 = vmatprep.subr.bf16.mxu0 0
        %1035 = vmatpush1.bf16.msra.mxu0 0
        %1036 = vmatprep.subr.bf16.mxu0 0
        %1037 = vmatpush1.bf16.msra.mxu0 0
        %1038 = vmatprep.mubr.bf16.mxu0 0
        %1039 = vmatmul.mubr.bf16.gmra.mrb[0].mxu0 %v1004
        %v1040 = vpop.f32.mrb[0].mxu0
        %v1041 = vadd.f32 %v991, %v1040
        %v1042 = vpop.f32.mrb[0].mxu0
        %v1043 = vpop.f32.mrb[0].mxu0
        %v1044 = vadd.f32 %v996, %v1043
        %v1045 = vpop.f32.mrb[0].mxu0
        %1046 = vdwg.mxu0
        %v1047 = vmax.f32 %v1041, %v1044
        %v1048 = vrot.slane %v1047, 4
        %v1049 = vmax.f32 %v1047, %v1048
        %v1050 = vrot.slane %v1049, 2
        %v1051 = vmax.f32 %v1049, %v1050
        %v1052 = vrot.slane %v1051, 1
        %v1053 = vmax.f32 %v1051, %v1052
        %v1054 = vsub.f32 %v1041, %v1053
        %v1055 = vsub.f32 %v1044, %v1053
        %v1056 = vmul.f32 %v1054, 1.442695
        %v1057 = vpow.pop %v1056
        %v1058 = vmul.f32 %v1055, 1.442695
        %v1059 = vpow.pop %v1058
        %v1060 = vadd.f32 %v1057, %v1059
        %v1061 = vrot.slane %v1060, 4
        %v1062 = vadd.f32 %v1060, %v1061
        %v1063 = vrot.slane %v1062, 2
        %v1064 = vadd.f32 %v1062, %v1063
        %v1065 = vrot.slane %v1064, 1
        %v1066 = vadd.f32 %v1064, %v1065
        %v1067 = vrcp.pop %v1066
        %v1068 = vmul.f32 %v1057, %v1067
        %v1069 = vmul.f32 %v1059, %v1067
        %v1070 = vld [vmem:[%s671] sm:$0xf]
        %v1071 = vld [vmem:[%s671 + $0x4] sm:$0xf]
        %v1072 = vld [vmem:[%s671 + $0x8] sm:$0xf]
        %v1073 = vld [vmem:[%s671 + $0xc] sm:$0xf]
        %v1074 = vpack.c.bf16 %v1069, %v1068
        %v1079 = vunpack.c.l.b16 %v1070
        %v1080 = vunpack.c.l.b16 %v1071
        %v1081 = vunpack.c.l.b16 %v1072
        %v1082 = vunpack.c.l.b16 %v1073
        %v1083 = vpack.c.b16 %v1080, %v1079
        %v1084 = vpack.c.b16 %v1082, %v1081
        %vm1085 = vcmask 130048
        %v1087 = vsel %vm1085, %v1083, 0
        %v1090 = vsel %vm1085, %v1084, 0
        %1092 = vmatprep.subr.bf16.mxu0 0
        %1093 = vmatpush1.bf16.msra.mxu0 %v1074
        %1094 = vmatprep.subr.bf16.mxu0 0
        %1095 = vmatpush1.bf16.msra.mxu0 0
        %1096 = vmatprep.subr.bf16.mxu0 0
        %1097 = vmatpush1.bf16.msra.mxu0 0
        %1098 = vmatprep.subr.bf16.mxu0 0
        %1099 = vmatpush1.bf16.msra.mxu0 0
        %1100 = vmatprep.subr.bf16.mxu0 0
        %1101 = vmatpush1.bf16.msra.mxu0 0
        %1102 = vmatprep.subr.bf16.mxu0 0
        %1103 = vmatpush1.bf16.msra.mxu0 0
        %1104 = vmatprep.subr.bf16.mxu0 0
        %1105 = vmatpush1.bf16.msra.mxu0 0
        %1106 = vmatprep.subr.bf16.mxu0 0
        %1107 = vmatpush1.bf16.msra.mxu0 0
        %1108 = vmatprep.subr.bf16.mxu0 0
        %1109 = vmatpush1.bf16.msra.mxu0 0
        %1110 = vmatprep.subr.bf16.mxu0 0
        %1111 = vmatpush1.bf16.msra.mxu0 0
        %1112 = vmatprep.subr.bf16.mxu0 0
        %1113 = vmatpush1.bf16.msra.mxu0 0
        %1114 = vmatprep.subr.bf16.mxu0 0
        %1115 = vmatpush1.bf16.msra.mxu0 0
        %1116 = vmatprep.subr.bf16.mxu0 0
        %1117 = vmatpush1.bf16.msra.mxu0 0
        %1118 = vmatprep.subr.bf16.mxu0 0
        %1119 = vmatpush1.bf16.msra.mxu0 0
        %1120 = vmatprep.subr.bf16.mxu0 0
        %1121 = vmatpush1.bf16.msra.mxu0 0
        %1122 = vmatprep.subr.bf16.mxu0 0
        %1123 = vmatpush1.bf16.msra.mxu0 0
        %1124 = vmatprep.mubr.bf16.mxu0 0
        %1125 = vmatmul.mubr.bf16.gmra.mrb[0].mxu0 %v1087
        %v1126 = vpop.f32.mrb[0].mxu0
        %v1127 = vadd.f32 0.0, %v1126
        %v1128 = vpop.f32.mrb[0].mxu0
        %v1129 = vpop.f32.mrb[0].mxu0
        %v1130 = vadd.f32 0.0, %v1129
        %v1131 = vpop.f32.mrb[0].mxu0
        %1132 = vmatprep.mubr.bf16.mxu0 0
        %1133 = vmatmul.mubr.bf16.gmra.mrb[0].mxu0 %v1090
        %v1134 = vpop.f32.mrb[0].mxu0
        %v1135 = vadd.f32 0.0, %v1134
        %v1136 = vpop.f32.mrb[0].mxu0
        %v1137 = vpop.f32.mrb[0].mxu0
        %v1138 = vadd.f32 0.0, %v1137
        %v1139 = vpop.f32.mrb[0].mxu0
        %1140 = vdwg.mxu0
        %v1141 = vadd.f32 %v872, %v1127
        %v1142 = vadd.f32 %v875, %v1130
        %v1143 = vadd.f32 %v880, %v1135
        %v1144 = vadd.f32 %v883, %v1138
        %v1145 = vld [vmem:[#allocation16] sm:$0xf]
        %v1146 = vld [vmem:[#allocation16 + $0x4] sm:$0xf]
        %v1147 = vld [vmem:[#allocation16 + $0x8] sm:$0xf]
        %v1148 = vld [vmem:[#allocation16 + $0xc] sm:$0xf]
        %v1149 = vld [vmem:[#allocation16 + $0x10] sm:$0xf]
        %v1150 = vld [vmem:[#allocation16 + $0x14] sm:$0xf]
        %v1151 = vld [vmem:[#allocation16 + $0x18] sm:$0xf]
        %v1152 = vld [vmem:[#allocation16 + $0x1c] sm:$0xf]
        %v1153 = vpack.c.bf16 %v1142, %v1141
        %v1154 = vpack.c.bf16 %v1144, %v1143
        %v1155 = vld [vmem:[#allocation17] sm:$0xff]
        %v1156 = vld [vmem:[#allocation17 + $0x8] sm:$0xff]
        %v1157 = vld [vmem:[#allocation17 + $0x10] sm:$0xff]
        %v1158 = vld [vmem:[#allocation17 + $0x18] sm:$0xff]
        %v1159 = vld [vmem:[#allocation17 + $0x20] sm:$0xff]
        %v1160 = vld [vmem:[#allocation17 + $0x28] sm:$0xff]
        %v1161 = vld [vmem:[#allocation17 + $0x30] sm:$0xff]
        %v1162 = vld [vmem:[#allocation17 + $0x38] sm:$0xff]
        %1164 = vset.pattern.permute.xlu0 0
        %1165 = vperm.xlu0 %1164, %v1155
        %v1166 = vpop.permute.xlu0 %1165
        %1169 = vset.pattern.permute.xlu0 0
        %1170 = vperm.xlu0 %1169, %v1156
        %v1171 = vpop.permute.xlu0 %1170
        %1174 = vset.pattern.permute.xlu0 0
        %1175 = vperm.xlu0 %1174, %v1157
        %v1176 = vpop.permute.xlu0 %1175
        %1179 = vset.pattern.permute.xlu0 0
        %1180 = vperm.xlu0 %1179, %v1158
        %v1181 = vpop.permute.xlu0 %1180
        %1184 = vset.pattern.permute.xlu0 0
        %1185 = vperm.xlu0 %1184, %v1159
        %v1186 = vpop.permute.xlu0 %1185
        %1189 = vset.pattern.permute.xlu0 0
        %1190 = vperm.xlu0 %1189, %v1160
        %v1191 = vpop.permute.xlu0 %1190
        %1194 = vset.pattern.permute.xlu0 0
        %1195 = vperm.xlu0 %1194, %v1161
        %v1196 = vpop.permute.xlu0 %1195
        %1199 = vset.pattern.permute.xlu0 0
        %1200 = vperm.xlu0 %1199, %v1162
        %v1201 = vpop.permute.xlu0 %1200
        %v1211 = vunpack.c.l.b16 %v1145
        %v1212 = vunpack.c.l.b16 %v1146
        %v1213 = vunpack.c.l.b16 %v1147
        %v1214 = vunpack.c.l.b16 %v1148
        %v1215 = vunpack.c.l.b16 %v1149
        %v1216 = vunpack.c.l.b16 %v1150
        %v1217 = vunpack.c.l.b16 %v1151
        %v1218 = vunpack.c.l.b16 %v1152
        %v1219 = vpack.c.b16 %v1212, %v1211
        %v1220 = vpack.c.b16 %v1214, %v1213
        %v1221 = vpack.c.b16 %v1216, %v1215
        %v1222 = vpack.c.b16 %v1218, %v1217
        %v1224 = vsel %vm926, %v1219, 0
        %v1227 = vsel %vm926, %v1220, 0
        %v1230 = vsel %vm926, %v1221, 0
        %v1233 = vsel %vm926, %v1222, 0
        %1235 = vmatprep.subr.bf16.mxu0 0
        %1236 = vmatpush1.bf16.msra.mxu0 %v1153
        %1237 = vmatprep.subr.bf16.mxu0 0
        %1238 = vmatpush1.bf16.msra.mxu0 %v1154
        %1239 = vmatprep.subr.bf16.mxu0 0
        %1240 = vmatpush1.bf16.msra.mxu0 0
        %1241 = vmatprep.subr.bf16.mxu0 0
        %1242 = vmatpush1.bf16.msra.mxu0 0
        %1243 = vmatprep.subr.bf16.mxu0 0
        %1244 = vmatpush1.bf16.msra.mxu0 0
        %1245 = vmatprep.subr.bf16.mxu0 0
        %1246 = vmatpush1.bf16.msra.mxu0 0
        %1247 = vmatprep.subr.bf16.mxu0 0
        %1248 = vmatpush1.bf16.msra.mxu0 0
        %1249 = vmatprep.subr.bf16.mxu0 0
        %1250 = vmatpush1.bf16.msra.mxu0 0
        %1251 = vmatprep.subr.bf16.mxu0 0
        %1252 = vmatpush1.bf16.msra.mxu0 0
        %1253 = vmatprep.subr.bf16.mxu0 0
        %1254 = vmatpush1.bf16.msra.mxu0 0
        %1255 = vmatprep.subr.bf16.mxu0 0
        %1256 = vmatpush1.bf16.msra.mxu0 0
        %1257 = vmatprep.subr.bf16.mxu0 0
        %1258 = vmatpush1.bf16.msra.mxu0 0
        %1259 = vmatprep.subr.bf16.mxu0 0
        %1260 = vmatpush1.bf16.msra.mxu0 0
        %1261 = vmatprep.subr.bf16.mxu0 0
        %1262 = vmatpush1.bf16.msra.mxu0 0
        %1263 = vmatprep.subr.bf16.mxu0 0
        %1264 = vmatpush1.bf16.msra.mxu0 0
        %1265 = vmatprep.subr.bf16.mxu0 0
        %1266 = vmatpush1.bf16.msra.mxu0 0
        %1267 = vmatprep.mubr.bf16.mxu0 0
        %1268 = vmatmul.mubr.bf16.gmra.mrb[0].mxu0 %v1224
        %v1269 = vpop.f32.mrb[0].mxu0
        %v1270 = vadd.f32 %v1166, %v1269
        %v1271 = vpop.f32.mrb[0].mxu0
        %v1272 = vpop.f32.mrb[0].mxu0
        %v1273 = vadd.f32 %v1171, %v1272
        %v1274 = vpop.f32.mrb[0].mxu0
        %1275 = vmatprep.mubr.bf16.mxu0 0
        %1276 = vmatmul.mubr.bf16.gmra.mrb[0].mxu0 %v1227
        %v1277 = vpop.f32.mrb[0].mxu0
        %v1278 = vadd.f32 %v1176, %v1277
        %v1279 = vpop.f32.mrb[0].mxu0
        %v1280 = vpop.f32.mrb[0].mxu0
        %v1281 = vadd.f32 %v1181, %v1280
        %v1282 = vpop.f32.mrb[0].mxu0
        %1283 = vmatprep.mubr.bf16.mxu0 0
        %1284 = vmatmul.mubr.bf16.gmra.mrb[0].mxu0 %v1230
        %v1285 = vpop.f32.mrb[0].mxu0
        %v1286 = vadd.f32 %v1186, %v1285
        %v1287 = vpop.f32.mrb[0].mxu0
        %v1288 = vpop.f32.mrb[0].mxu0
        %v1289 = vadd.f32 %v1191, %v1288
        %v1290 = vpop.f32.mrb[0].mxu0
        %1291 = vmatprep.mubr.bf16.mxu0 0
        %1292 = vmatmul.mubr.bf16.gmra.mrb[0].mxu0 %v1233
        %v1293 = vpop.f32.mrb[0].mxu0
        %v1294 = vadd.f32 %v1196, %v1293
        %v1295 = vpop.f32.mrb[0].mxu0
        %v1296 = vpop.f32.mrb[0].mxu0
        %v1297 = vadd.f32 %v1201, %v1296
        %v1298 = vpop.f32.mrb[0].mxu0
        %1299 = vdwg.mxu0
        %v1300 = vpack.c.bf16 %v1273, %v1270
        %v1301 = vpack.c.bf16 %v1281, %v1278
        %v1302 = vpack.c.bf16 %v1289, %v1286
        %v1303 = vpack.c.bf16 %v1297, %v1294
        %v1304 = vmul.bf16 %v1300, %v1300
        %v1305 = vmul.bf16 %v1301, %v1301
        %v1306 = vmul.bf16 %v1302, %v1302
        %v1307 = vmul.bf16 %v1303, %v1303
        %v1308 = vmul.bf16 %v1300, %v1304
        %v1309 = vmul.bf16 %v1301, %v1305
        %v1310 = vmul.bf16 %v1302, %v1306
        %v1311 = vmul.bf16 %v1303, %v1307
        %v1312 = vmul.bf16 %v1308, 1027030327
        %v1313 = vmul.bf16 %v1309, 1027030327
        %v1314 = vmul.bf16 %v1310, 1027030327
        %v1315 = vmul.bf16 %v1311, 1027030327
        %v1316 = vadd.bf16 %v1300, %v1312
        %v1317 = vadd.bf16 %v1301, %v1313
        %v1318 = vadd.bf16 %v1302, %v1314
        %v1319 = vadd.bf16 %v1303, %v1315
        %v1320 = vmul.bf16 %v1316, 1061961548
        %v1321 = vmul.bf16 %v1317, 1061961548
        %v1322 = vmul.bf16 %v1318, 1061961548
        %v1323 = vmul.bf16 %v1319, 1061961548
        %v1324 = vtanh.bf16.pop %v1320
        %v1325 = vtanh.bf16.pop %v1321
        %v1326 = vtanh.bf16.pop %v1322
        %v1327 = vtanh.bf16.pop %v1323
        %v1328 = vadd.bf16 %v1324, 1065369472
        %v1329 = vadd.bf16 %v1325, 1065369472
        %v1330 = vadd.bf16 %v1326, 1065369472
        %v1331 = vadd.bf16 %v1327, 1065369472
        %v1332 = vmul.bf16 %v1328, 1056980736
        %v1333 = vmul.bf16 %v1329, 1056980736
        %v1334 = vmul.bf16 %v1330, 1056980736
        %v1335 = vmul.bf16 %v1331, 1056980736
        %v1336 = vmul.bf16 %v1300, %v1332
        %v1337 = vmul.bf16 %v1301, %v1333
        %v1338 = vmul.bf16 %v1302, %v1334
        %v1339 = vmul.bf16 %v1303, %v1335
        %v1340 = vld [vmem:[#allocation19] sm:$0xf]
        %v1341 = vld [vmem:[#allocation19 + $0x4] sm:$0xf]
        %v1342 = vld [vmem:[#allocation19 + $0x8] sm:$0xf]
        %v1343 = vld [vmem:[#allocation19 + $0xc] sm:$0xf]
        %v1344 = vld [vmem:[#allocation20] sm:$0xff]
        %v1345 = vld [vmem:[#allocation20 + $0x8] sm:$0xff]
        %v1346 = vld [vmem:[#allocation20 + $0x10] sm:$0xff]
        %v1347 = vld [vmem:[#allocation20 + $0x18] sm:$0xff]
        %1349 = vset.pattern.permute.xlu0 0
        %1350 = vperm.xlu0 %1349, %v1344
        %v1351 = vpop.permute.xlu0 %1350
        %1354 = vset.pattern.permute.xlu0 0
        %1355 = vperm.xlu0 %1354, %v1345
        %v1356 = vpop.permute.xlu0 %1355
        %1359 = vset.pattern.permute.xlu0 0
        %1360 = vperm.xlu0 %1359, %v1346
        %v1361 = vpop.permute.xlu0 %1360
        %1364 = vset.pattern.permute.xlu0 0
        %1365 = vperm.xlu0 %1364, %v1347
        %v1366 = vpop.permute.xlu0 %1365
        %v1372 = vunpack.c.l.b16 %v1340
        %v1373 = vunpack.c.l.b16 %v1341
        %v1374 = vunpack.c.l.b16 %v1342
        %v1375 = vunpack.c.l.b16 %v1343
        %v1376 = vpack.c.b16 %v1373, %v1372
        %v1377 = vpack.c.b16 %v1375, %v1374
        %vm1378 = vcmask 523264
        %v1380 = vsel %vm1378, %v1376, 0
        %v1383 = vsel %vm1378, %v1377, 0
        %1385 = vmatprep.subr.bf16.mxu0 0
        %1386 = vmatpush1.bf16.msra.mxu0 %v1336
        %1387 = vmatprep.subr.bf16.mxu0 0
        %1388 = vmatpush1.bf16.msra.mxu0 %v1337
        %1389 = vmatprep.subr.bf16.mxu0 0
        %1390 = vmatpush1.bf16.msra.mxu0 %v1338
        %1391 = vmatprep.subr.bf16.mxu0 0
        %1392 = vmatpush1.bf16.msra.mxu0 %v1339
        %1393 = vmatprep.subr.bf16.mxu0 0
        %1394 = vmatpush1.bf16.msra.mxu0 0
        %1395 = vmatprep.subr.bf16.mxu0 0
        %1396 = vmatpush1.bf16.msra.mxu0 0
        %1397 = vmatprep.subr.bf16.mxu0 0
        %1398 = vmatpush1.bf16.msra.mxu0 0
        %1399 = vmatprep.subr.bf16.mxu0 0
        %1400 = vmatpush1.bf16.msra.mxu0 0
        %1401 = vmatprep.subr.bf16.mxu0 0
        %1402 = vmatpush1.bf16.msra.mxu0 0
        %1403 = vmatprep.subr.bf16.mxu0 0
        %1404 = vmatpush1.bf16.msra.mxu0 0
        %1405 = vmatprep.subr.bf16.mxu0 0
        %1406 = vmatpush1.bf16.msra.mxu0 0
        %1407 = vmatprep.subr.bf16.mxu0 0
        %1408 = vmatpush1.bf16.msra.mxu0 0
        %1409 = vmatprep.subr.bf16.mxu0 0
        %1410 = vmatpush1.bf16.msra.mxu0 0
        %1411 = vmatprep.subr.bf16.mxu0 0
        %1412 = vmatpush1.bf16.msra.mxu0 0
        %1413 = vmatprep.subr.bf16.mxu0 0
        %1414 = vmatpush1.bf16.msra.mxu0 0
        %1415 = vmatprep.subr.bf16.mxu0 0
        %1416 = vmatpush1.bf16.msra.mxu0 0
        %1417 = vmatprep.mubr.bf16.mxu0 0
        %1418 = vmatmul.mubr.bf16.gmra.mrb[0].mxu0 %v1380
        %v1419 = vpop.f32.mrb[0].mxu0
        %v1420 = vadd.f32 %v1351, %v1419
        %v1421 = vpop.f32.mrb[0].mxu0
        %v1422 = vpop.f32.mrb[0].mxu0
        %v1423 = vadd.f32 %v1356, %v1422
        %v1424 = vpop.f32.mrb[0].mxu0
        %1425 = vmatprep.mubr.bf16.mxu0 0
        %1426 = vmatmul.mubr.bf16.gmra.mrb[0].mxu0 %v1383
        %v1427 = vpop.f32.mrb[0].mxu0
        %v1428 = vadd.f32 %v1361, %v1427
        %v1429 = vpop.f32.mrb[0].mxu0
        %v1430 = vpop.f32.mrb[0].mxu0
        %v1431 = vadd.f32 %v1366, %v1430
        %v1432 = vpop.f32.mrb[0].mxu0
        %1433 = vdwg.mxu0
        %v1434 = vadd.f32 %v1141, %v1420
        %v1435 = vadd.f32 %v1142, %v1423
        %v1436 = vadd.f32 %v1143, %v1428
        %v1437 = vadd.f32 %v1144, %v1431
        %v1438 = vld [vmem:[#allocation22] sm:$0x3]
        %v1439 = vpack.c.bf16 %v1435, %v1434
        %v1440 = vpack.c.bf16 %v1437, %v1436
        %v1441 = vld [vmem:[#allocation23] sm:$0xf]
        %1443 = vset.pattern.permute.xlu0 0
        %1444 = vperm.xlu0 %1443, %v1441
        %v1445 = vpop.permute.xlu0 %1444
        %v1448 = vsel %vm926, %v1438, 0
        %1450 = vmatprep.subr.bf16.mxu0 0
        %1451 = vmatpush1.bf16.msra.mxu0 %v1439
        %1452 = vmatprep.subr.bf16.mxu0 0
        %1453 = vmatpush1.bf16.msra.mxu0 %v1440
        %1454 = vmatprep.subr.bf16.mxu0 0
        %1455 = vmatpush1.bf16.msra.mxu0 0
        %1456 = vmatprep.subr.bf16.mxu0 0
        %1457 = vmatpush1.bf16.msra.mxu0 0
        %1458 = vmatprep.subr.bf16.mxu0 0
        %1459 = vmatpush1.bf16.msra.mxu0 0
        %1460 = vmatprep.subr.bf16.mxu0 0
        %1461 = vmatpush1.bf16.msra.mxu0 0
        %1462 = vmatprep.subr.bf16.mxu0 0
        %1463 = vmatpush1.bf16.msra.mxu0 0
        %1464 = vmatprep.subr.bf16.mxu0 0
        %1465 = vmatpush1.bf16.msra.mxu0 0
        %1466 = vmatprep.subr.bf16.mxu0 0
        %1467 = vmatpush1.bf16.msra.mxu0 0
        %1468 = vmatprep.subr.bf16.mxu0 0
        %1469 = vmatpush1.bf16.msra.mxu0 0
        %1470 = vmatprep.subr.bf16.mxu0 0
        %1471 = vmatpush1.bf16.msra.mxu0 0
        %1472 = vmatprep.subr.bf16.mxu0 0
        %1473 = vmatpush1.bf16.msra.mxu0 0
        %1474 = vmatprep.subr.bf16.mxu0 0
        %1475 = vmatpush1.bf16.msra.mxu0 0
        %1476 = vmatprep.subr.bf16.mxu0 0
        %1477 = vmatpush1.bf16.msra.mxu0 0
        %1478 = vmatprep.subr.bf16.mxu0 0
        %1479 = vmatpush1.bf16.msra.mxu0 0
        %1480 = vmatprep.subr.bf16.mxu0 0
        %1481 = vmatpush1.bf16.msra.mxu0 0
        %1482 = vmatprep.mubr.bf16.mxu0 0
        %1483 = vmatmul.mubr.bf16.gmra.mrb[0].mxu0 %v1448
        %v1484 = vpop.f32.mrb[0].mxu0
        %v1485 = vadd.f32 %v1445, %v1484
        %v1486 = vpop.f32.mrb[0].mxu0
        %v1487 = vpop.f32.mrb[0].mxu0
        %v1488 = vpop.f32.mrb[0].mxu0
        %1489 = vdwg.mxu0
        %1490 = vst [vmem:[%s780] sm:$0xf] %v1485
        %s1491 = sand.u32 %s385, 1
        %s1492 = scalar_lea.sflag [#allocation4], %s1491
        %s1493 = sand.u32 %s385, 1
        %s1494 = smul.addr %s1493, 4
        %s1495 = scalar_lea.vmem [#allocation25], %s1494
        // Predicated region
        $region133: #{run.1} parent=75 // pred_check
          %p1496 = pneg %p395
        $region134: #{run.1} parent=75 // pred_check_branch
          %1498 = sbr.rel (%p1496) target = $region136
        $region135: #{run.1} parent=75 // pred_region
          %s1500 = ssub.s32 64, 64
          %1501 = vsyncadd %s1492, %s1500
          %s1502 = sadd.s32 %s47, %s46
          %s1503 = smul.addr %s1502, 64
          %s1504 = scalar_lea.hbm %s14, %s1503
          %s1506 = sshll.u32 %s1495, 4
          %s1507 = int_to_ptr.vmem [resolvable:$true] %s1506
          %1509 = dma.vmem_to_hbm [thread:$0]  %s1507, 64, %s1504, %s1492
        $region136: #{run.1} parent=75 // pred_fallthru
          _
      $region76: #{run.1} parent=5 // pred_fallthru
        _
      %p1510 = scmp.le.s32.totalorder 2, %s37
      // Predicated region
      $region137: #{run.1} parent=5 // pred_check
        %p1511 = pneg %p1510
      $region138: #{run.1} parent=5 // pred_check_branch
        %1513 = sbr.rel (%p1511) target = $region140
      $region139: #{run.1} parent=5 // pred_region
        %s1514 = ssub.s32 %s37, 2
        // Predicated region
        $region141: #{run.1} parent=139 // pred_check
          %p1515 = pneg %p401
        $region142: #{run.1} parent=139 // pred_check_branch
          %1517 = sbr.rel (%p1515) target = $region144
        $region143: #{run.1} parent=139 // pred_region
          %s1518 = sand.u32 %s386, 1
          %s1519 = scalar_lea.sflag [#allocation4], %s1518
          %s1520 = sand.u32 %s386, 1
          %s1521 = smul.addr %s1520, 4
          %s1522 = scalar_lea.vmem [#allocation25], %s1521
          %1523 = dma.done %s1519, 64
        $region144: #{run.1} parent=139 // pred_fallthru
          _
      $region140: #{run.1} parent=5 // pred_fallthru
        _
    $region6: #{run.1} parent=1 // loop_footer
      %s41 = sadd.s32 1, %s37
    $region7: #{run.1} parent=1 // loop_footer_branch
      %36 = sbr.rel target = $region3
    $region8: #{run.1} parent=1 // loop_exit
      _
    %1524 = vsyncpa [#allocation3], 1
    %s1525 = scalar_lea.sflag [#allocation3], 1
    %1526 = vsyncpa %s1525, 1
    %1527 = vsyncpa [#allocation6], 1
    %s1528 = scalar_lea.sflag [#allocation6], 1
    %1529 = vsyncpa %s1528, 1
    %1530 = vsyncpa [#allocation9], 1
    %s1531 = scalar_lea.sflag [#allocation9], 1
    %1532 = vsyncpa %s1531, 1
    %1533 = vsyncpa [#allocation12], 1
    %1534 = vsyncpa [#allocation15], 1
    %1535 = vsyncpa [#allocation18], 1
    %1536 = vsyncpa [#allocation21], 1
    %1537 = vsyncpa [#allocation24], 1
    %1538 = vsyncpa [#allocation4], 1
    %s1539 = scalar_lea.sflag [#allocation4], 1
    %1540 = vsyncpa %s1539, 1

</llo_original>
